<compile_context>
chip_gen: v7x
topology: tpu7x:2x2x1
jax: 0.10.0
libtpu: 0.0.40
codegen_flags: <defaults>
</compile_context>

<pallas_src>
import functools
import math

import jax
import jax.numpy as jnp
import numpy as np
from jax.experimental import pallas as pl
from jax.experimental.pallas import tpu as pltpu

EPS = 1e-5


# ---------------------------------------------------------------------------
# Kernels
# ---------------------------------------------------------------------------
def _identity_unit_kernel(params_ref, cmask_ref, x_ref, o_ref, hb_ref, *, c, H, W):
    """stride == 1 and inps == oups.

    x_ref block: (1, 2c, H*W) — channels on sublanes, flattened spatial on
    lanes.  The residual's padded 3x3 conv is computed with static shifted
    flat reads from a zero-margined scratch + two column-wrap masks, so no
    padded copy of the input ever exists in HBM.
    """
    HW = H * W
    M = W + 1                                    # margin >= largest |tap shift|

    # packed-parameter offsets (BatchNorm already folded into w / b)
    o_w1 = 0
    o_b1 = o_w1 + c * c
    o_wd = o_b1 + c
    o_bd = o_wd + 9 * c
    o_w2 = o_bd + c
    o_b2 = o_w2 + c * c
    w1 = lambda ci, co: params_ref[o_w1 + ci * c + co]
    b1 = lambda co: params_ref[o_b1 + co]
    wd = lambda k, ch: params_ref[o_wd + k * c + ch]
    bd = lambda ch: params_ref[o_bd + ch]
    w2 = lambda ci, co: params_ref[o_w2 + ci * c + co]
    b2 = lambda co: params_ref[o_b2 + co]
    invp = lambda q: (q % 2) * c + q // 2        # inverse of channel_shuffle(g=2)

    x = x_ref[0]                                 # (2c, HW)
    cm_left = cmask_ref[0, :]                    # kills w==0 wrap of kw=0 taps
    cm_right = cmask_ref[1, :]                   # kills w==W-1 wrap of kw=2 taps

    # residual 1x1 + BN + ReLU on the second channel half, stored into the
    # zero-margined scratch so the depthwise taps read zeros outside the image
    hb_ref[...] = jnp.zeros_like(hb_ref)
    for co in range(c):
        acc = None
        for ci in range(c):
            t = x[c + ci, :] * w1(ci, co)
            acc = t if acc is None else acc + t
        hb_ref[co, M:M + HW] = jnp.maximum(acc + b1(co), 0.0)

    # depthwise 3x3 (+BN): static shifted flat reads; the two wrap masks are
    # applied once per kw-group per channel (precomputed at trace time)
    drows = []
    for ch in range(c):
        acc = None
        for kw in range(3):
            col = None
            for kh in range(3):
                d = (kh - 1) * W + (kw - 1)
                t = hb_ref[ch, M + d:M + d + HW] * wd(kh * 3 + kw, ch)
                col = t if col is None else col + t
            if kw == 0:
                col = col * cm_left
            elif kw == 2:
                col = col * cm_right
            acc = col if acc is None else acc + col
        drows.append(acc + bd(ch))

    # residual 1x1 + BN + ReLU, written straight to its shuffled output row
    for co in range(c):
        acc = None
        for ci in range(c):
            t = drows[ci] * w2(ci, co)
            acc = t if acc is None else acc + t
        o_ref[0, invp(c + co), :] = jnp.maximum(acc + b2(co), 0.0)

    # shortcut half: pure passthrough copy to its shuffled output row
    for i in range(c):
        o_ref[0, invp(i), :] = x[i, :]


def _down_unit_kernel(params_ref, imask_ref, x_ref, o_ref, *, s, cin, half,
                      HC, wc, ho):
    """stride != 1 or inps != oups.

    x_ref block: (1, s*s, cin, HC*wc) — the zero-padded input split into s x s
    spatial phase planes, each flattened onto the lane axis, so every tap of
    the strided 3x3 depthwise conv is a static contiguous slice.  Output rows
    keep the phase width wc (the wrapper trims the wc - wo garbage columns).
    """
    Lp = HC * wc
    Lo = ho * wc
    nph = s * s

    o_w1 = 0
    o_b1 = o_w1 + cin * cin
    o_wdr = o_b1 + cin
    o_bdr = o_wdr + 9 * cin
    o_wds = o_bdr + cin
    o_bds = o_wds + 9 * cin
    o_w2 = o_bds + cin
    o_b2 = o_w2 + cin * half
    o_ws = o_b2 + half
    o_bs = o_ws + cin * half
    w1 = lambda ci, co: params_ref[o_w1 + ci * cin + co]
    b1 = lambda co: params_ref[o_b1 + co]
    wdr = lambda k, ch: params_ref[o_wdr + k * cin + ch]
    bdr = lambda ch: params_ref[o_bdr + ch]
    wds = lambda k, ch: params_ref[o_wds + k * cin + ch]
    bds = lambda ch: params_ref[o_bds + ch]
    w2 = lambda ci, co: params_ref[o_w2 + ci * half + co]
    b2 = lambda co: params_ref[o_b2 + co]
    ws = lambda ci, co: params_ref[o_ws + ci * half + co]
    bs = lambda co: params_ref[o_bs + co]
    invp = lambda q: (q % 2) * half + q // 2     # inverse of channel_shuffle(g=2)

    planes = [x_ref[0, p] for p in range(nph)]   # each (cin, Lp)

    # residual 1x1 + BN + ReLU on every phase plane; the precomputed interior
    # mask forces the zero-padding ring (and round-up rows/cols) back to 0,
    # because this feeds a padding=1 conv whose out-of-image taps must read 0
    hres = []
    for p in range(nph):
        im = imask_ref[p, :]
        rows = []
        for co in range(cin):
            acc = None
            for ci in range(cin):
                t = planes[p][ci, :] * w1(ci, co)
                acc = t if acc is None else acc + t
            rows.append(jnp.maximum(acc + b1(co), 0.0) * im)
        hres.append(rows)

    # stride-s 3x3 depthwise (+BN) for both branches: tap (kh, kw) lives in
    # phase (kh % s, kw % s) at static flat offset (kh // s) * wc + kw // s
    dres, dsc = [], []
    for ch in range(cin):
        ar = None
        asc = None
        for k in range(9):
            kh, kw = divmod(k, 3)
            p = (kh % s) * s + (kw % s)
            d0 = (kh // s) * wc + (kw // s)
            tr = hres[p][ch][d0:d0 + Lo] * wdr(k, ch)
            ts = planes[p][ch, d0:d0 + Lo] * wds(k, ch)
            ar = tr if ar is None else ar + tr
            asc = ts if asc is None else asc + ts
        dres.append(ar + bdr(ch))
        dsc.append(asc + bds(ch))

    # final 1x1 + BN + ReLU of each branch, written straight to the shuffled
    # output row (concat([shortcut, residual], ch) + channel_shuffle(g=2))
    for j in range(half):
        accr = None
        accs = None
        for ci in range(cin):
            tr = dres[ci] * w2(ci, j)
            ts = dsc[ci] * ws(ci, j)
            accr = tr if accr is None else accr + tr
            accs = ts if accs is None else accs + ts
        o_ref[0, invp(half + j), :] = jnp.maximum(accr + b2(j), 0.0)
        o_ref[0, invp(j), :] = jnp.maximum(accs + bs(j), 0.0)


# ---------------------------------------------------------------------------
# pallas_call wrappers
# ---------------------------------------------------------------------------
def _compiler_params():
    return pltpu.CompilerParams(
        dimension_semantics=("parallel",),       # megacore: split the batch grid
        vmem_limit_bytes=48 * 1024 * 1024,       # v7x-safe (64 MiB physical)
    )


def _run_identity_unit(params, cmask, xflat, *, N, C, H, W):
    HW = H * W
    c = C // 2
    kernel = functools.partial(_identity_unit_kernel, c=c, H=H, W=W)
    flops = N * HW * (2 * c * c * 2 + 9 * c * 2)
    bytes_accessed = 4 * (xflat.size + cmask.size + params.size + N * C * HW)
    return pl.pallas_call(
        kernel,
        out_shape=jax.ShapeDtypeStruct((N, C, HW), jnp.float32),
        grid=(N,),
        in_specs=[
            pl.BlockSpec(memory_space=pltpu.MemorySpace.SMEM),   # packed weights
            pl.BlockSpec((2, HW), lambda n: (0, 0)),             # resident masks
            pl.BlockSpec((1, C, HW), lambda n: (n, 0, 0)),
        ],
        out_specs=pl.BlockSpec((1, C, HW), lambda n: (n, 0, 0)),
        scratch_shapes=[pltpu.VMEM((c, HW + 2 * (W + 1)), jnp.float32)],
        compiler_params=_compiler_params(),
        cost_estimate=pl.CostEstimate(flops=int(flops), transcendentals=0,
                                      bytes_accessed=int(bytes_accessed)),
    )(params, cmask, xflat)


def _run_down_unit(params, imask, planes, *, N, s, cin, cout, HC, wc, ho):
    Lp = HC * wc
    Lo = ho * wc
    nph = s * s
    half = cout // 2
    kernel = functools.partial(_down_unit_kernel, s=s, cin=cin, half=half,
                               HC=HC, wc=wc, ho=ho)
    flops = N * (nph * Lp * cin * cin * 2 + 2 * 9 * cin * Lo * 2
                 + 2 * cin * half * Lo * 2)
    bytes_accessed = 4 * (planes.size + imask.size + params.size + N * cout * Lo)
    return pl.pallas_call(
        kernel,
        out_shape=jax.ShapeDtypeStruct((N, cout, Lo), jnp.float32),
        grid=(N,),
        in_specs=[
            pl.BlockSpec(memory_space=pltpu.MemorySpace.SMEM),   # packed weights
            pl.BlockSpec((nph, Lp), lambda n: (0, 0)),           # resident masks
            pl.BlockSpec((1, nph, cin, Lp), lambda n: (n, 0, 0, 0)),
        ],
        out_specs=pl.BlockSpec((1, cout, Lo), lambda n: (n, 0, 0)),
        compiler_params=_compiler_params(),
        cost_estimate=pl.CostEstimate(flops=int(flops), transcendentals=0,
                                      bytes_accessed=int(bytes_accessed)),
    )(params, imask, planes)


# ---------------------------------------------------------------------------
# Trace-time helpers (layout, masks, BN folding)
# ---------------------------------------------------------------------------
def _phase_planes_nchw(x_nchw, s):
    """Zero-pad (padding=1 plus round-up) and split into s*s flattened spatial
    phase planes, keeping channels on a leading axis (one fused XLA pass)."""
    N, C, H, W = x_nchw.shape
    ho, wo = -(-H // s), -(-W // s)
    hc, wc = -(-(H + 2) // s), -(-(W + 2) // s)
    extra = 2 // s
    HC = max(hc, ho + extra + (1 if extra else 0))   # room for the tap over-read
    xpad = jnp.pad(x_nchw, ((0, 0), (0, 0),
                            (1, HC * s - H - 1), (1, wc * s - W - 1)))
    xr = xpad.reshape(N, C, HC, s, wc, s)
    xr = jnp.transpose(xr, (0, 3, 5, 1, 2, 4))       # (N, pr, pc, C, i, j)
    return xr.reshape(N, s * s, C, HC * wc), HC, wc, ho, wo


def _interior_mask(s, HC, wc, H, W):
    """(s*s, HC*wc) 0/1 mask of phase positions inside the un-padded image."""
    ii = np.arange(HC)[:, None] * s
    jj = np.arange(wc)[None, :] * s
    rows = []
    for pr in range(s):
        for pc in range(s):
            r = ii + pr
            c = jj + pc
            m = ((r >= 1) & (r <= H) & (c >= 1) & (c <= W)).astype(np.float32)
            rows.append(m.reshape(-1))
    return jnp.asarray(np.stack(rows))


def _col_wrap_masks(H, W):
    """(2, H*W) masks killing the row-wrap of the kw=0 / kw=2 dw taps."""
    col = np.arange(H * W) % W
    return jnp.asarray(np.stack([(col != 0).astype(np.float32),
                                 (col != W - 1).astype(np.float32)]))


def _fold_bn_pw(w, bn):
    scale, bias = bn
    return w * scale[None, :], bias


def _fold_bn_dw(w3x3, bn):
    scale, bias = bn
    return (w3x3 * scale[None, None, :]).reshape(9, -1), bias


# ---------------------------------------------------------------------------
# Pure-JAX reference (independent of the Pallas path)
# ---------------------------------------------------------------------------
def _ref_pw(x, w, scale, bias, relu):
    cin, cout = w.shape
    y = jax.lax.conv_general_dilated(
        x, w.reshape(1, 1, cin, cout), (1, 1), "VALID",
        dimension_numbers=("NHWC", "HWIO", "NHWC"))
    y = y * scale + bias
    return jnp.maximum(y, 0.0) if relu else y


def _ref_dw(x, w3x3, scale, bias, stride, relu):
    C = x.shape[-1]
    y = jax.lax.conv_general_dilated(
        x, w3x3.reshape(3, 3, 1, C), (stride, stride), ((1, 1), (1, 1)),
        dimension_numbers=("NHWC", "HWIO", "NHWC"), feature_group_count=C)
    y = y * scale + bias
    return jnp.maximum(y, 0.0) if relu else y


def _channel_shuffle_nhwc(x, g):
    N, H, W, C = x.shape
    x = x.reshape(N, H, W, C // g, g)
    x = jnp.transpose(x, (0, 1, 2, 4, 3))
    return x.reshape(N, H, W, C)


# ---------------------------------------------------------------------------
# Deterministic synthetic parameter init (inference-mode BN)
# ---------------------------------------------------------------------------
def _bn_params(key, c):
    k1, k2, k3, k4 = jax.random.split(key, 4)
    gamma = jax.random.uniform(k1, (c,), jnp.float32, 0.5, 1.5)
    beta = jax.random.normal(k2, (c,), jnp.float32) * 0.1
    mean = jax.random.normal(k3, (c,), jnp.float32) * 0.1
    var = jax.random.uniform(k4, (c,), jnp.float32, 0.5, 1.5)
    scale = gamma / jnp.sqrt(var + EPS)
    bias = beta - mean * scale
    return scale, bias


def _pw_w(key, cin, cout):
    return jax.random.normal(key, (cin, cout), jnp.float32) * (1.0 / math.sqrt(cin))


def _dw_w(key, c):
    return jax.random.normal(key, (3, 3, c), jnp.float32) * (1.0 / 3.0)


# ---------------------------------------------------------------------------
# ShuffleUnit
# ---------------------------------------------------------------------------
class ShuffleUnitPallas:
    def __init__(self, inps, oups, stride, key):
        self.inps, self.oups, self.stride = inps, oups, stride
        self.downsample = stride != 1 or inps != oups
        p = {}
        if self.downsample:
            ks = jax.random.split(key, 10)
            c_half = oups // 2
            p["r_pw1_w"], p["r_bn1"] = _pw_w(ks[0], inps, inps), _bn_params(ks[1], inps)
            p["r_dw_w"], p["r_bn2"] = _dw_w(ks[2], inps), _bn_params(ks[3], inps)
            p["r_pw2_w"], p["r_bn3"] = _pw_w(ks[4], inps, c_half), _bn_params(ks[5], c_half)
            p["s_dw_w"], p["s_bn1"] = _dw_w(ks[6], inps), _bn_params(ks[7], inps)
            p["s_pw_w"], p["s_bn2"] = _pw_w(ks[8], inps, c_half), _bn_params(ks[9], c_half)
        else:
            c = inps // 2
            ks = jax.random.split(key, 6)
            p["r_pw1_w"], p["r_bn1"] = _pw_w(ks[0], c, c), _bn_params(ks[1], c)
            p["r_dw_w"], p["r_bn2"] = _dw_w(ks[2], c), _bn_params(ks[3], c)
            p["r_pw2_w"], p["r_bn3"] = _pw_w(ks[4], c, c), _bn_params(ks[5], c)
        self.p = p
        self._fwd = jax.jit(self._pallas_forward)

    # ---------------- Pallas path (NCHW in, NCHW out) ----------------
    def _pallas_forward(self, x_nchw):
        x = x_nchw.astype(jnp.float32)
        N, _, H, W = x.shape
        p = self.p
        if self.downsample:
            s, cin, cout = self.stride, self.inps, self.oups
            planes, HC, wc, ho, wo = _phase_planes_nchw(x, s)
            # fold inference-mode BatchNorm into the conv weights / biases and
            # pack everything into one flat SMEM operand
            w1, b1 = _fold_bn_pw(p["r_pw1_w"], p["r_bn1"])
            wdr, bdr = _fold_bn_dw(p["r_dw_w"], p["r_bn2"])
            w2, b2 = _fold_bn_pw(p["r_pw2_w"], p["r_bn3"])
            wds, bds = _fold_bn_dw(p["s_dw_w"], p["s_bn1"])
            wsc, bsc = _fold_bn_pw(p["s_pw_w"], p["s_bn2"])
            params = jnp.concatenate([
                w1.reshape(-1), b1, wdr.reshape(-1), bdr, wds.reshape(-1), bds,
                w2.reshape(-1), b2, wsc.reshape(-1), bsc])
            imask = _interior_mask(s, HC, wc, H, W)
            y = _run_down_unit(params, imask, planes, N=N, s=s, cin=cin,
                               cout=cout, HC=HC, wc=wc, ho=ho)
            y = y.reshape(N, cout, ho, wc)[..., :wo]      # trim garbage columns
        else:
            C = self.inps
            w1, b1 = _fold_bn_pw(p["r_pw1_w"], p["r_bn1"])
            wd, bd = _fold_bn_dw(p["r_dw_w"], p["r_bn2"])
            w2, b2 = _fold_bn_pw(p["r_pw2_w"], p["r_bn3"])
            params = jnp.concatenate([
                w1.reshape(-1), b1, wd.reshape(-1), bd, w2.reshape(-1), b2])
            cmask = _col_wrap_masks(H, W)
            y = _run_identity_unit(params, cmask, x.reshape(N, C, H * W),
                                   N=N, C=C, H=H, W=W)
            y = y.reshape(N, C, H, W)                      # free reshape
        return y

    def __call__(self, x_nchw):
        return self._fwd(x_nchw)

    # ---------------- pure-JAX reference ----------------
    def reference(self, x_nchw):
        p = self.p
        x = jnp.transpose(x_nchw, (0, 2, 3, 1)).astype(jnp.float32)
        if self.downsample:
            r = _ref_pw(x, p["r_pw1_w"], *p["r_bn1"], True)
            r = _ref_dw(r, p["r_dw_w"], *p["r_bn2"], self.stride, False)
            r = _ref_pw(r, p["r_pw2_w"], *p["r_bn3"], True)
            s = _ref_dw(x, p["s_dw_w"], *p["s_bn1"], self.stride, False)
            s = _ref_pw(s, p["s_pw_w"], *p["s_bn2"], True)
            y = jnp.concatenate([s, r], axis=-1)
        else:
            c = self.inps // 2
            r = _ref_pw(x[..., c:], p["r_pw1_w"], *p["r_bn1"], True)
            r = _ref_dw(r, p["r_dw_w"], *p["r_bn2"], 1, False)
            r = _ref_pw(r, p["r_pw2_w"], *p["r_bn3"], True)
            y = jnp.concatenate([x[..., :c], r], axis=-1)
        y = _channel_shuffle_nhwc(y, 2)
        return jnp.transpose(y, (0, 3, 1, 2))


# ---------------------------------------------------------------------------
if __name__ == "__main__":
    key = jax.random.PRNGKey(0)
    kx, kp1, kp2 = jax.random.split(key, 3)
    x = jax.random.normal(kx, (2, 4, 16, 16), jnp.float32)  # NCHW, like PyTorch

    # Down-sampling / channel-expanding unit (stride=2, inps != oups branch).
    m1 = ShuffleUnitPallas(inps=4, oups=8, stride=2, key=kp1)
    y1 = jax.block_until_ready(m1(x))
    r1 = m1.reference(x)
    assert y1.shape == (2, 8, 8, 8), y1.shape
    err1 = float(jnp.max(jnp.abs(y1 - r1)))
    assert jnp.allclose(y1, r1, atol=1e-4, rtol=1e-4), err1

    # Identity-shortcut unit (stride=1, inps == oups branch with channel split).
    m2 = ShuffleUnitPallas(inps=4, oups=4, stride=1, key=kp2)
    y2 = jax.block_until_ready(m2(x))
    r2 = m2.reference(x)
    assert y2.shape == (2, 4, 16, 16), y2.shape
    err2 = float(jnp.max(jnp.abs(y2 - r2)))
    assert jnp.allclose(y2, r2, atol=1e-4, rtol=1e-4), err2

    print("KERNEL_OK")
</pallas_src>

<mosaic_0001>
module attributes {stable_mosaic.version = 11 : i64} {
  func.func @_down_unit_kernel(%arg0: i32, %arg1: memref<140xf32, #tpu.memory_space<smem>>, %arg2: memref<4x90xf32, #tpu.memory_space<vmem>>, %arg3: memref<1x4x4x90xf32, #tpu.memory_space<vmem>>, %arg4: memref<1x8x72xf32, #tpu.memory_space<vmem>>) attributes {dimension_semantics = [#tpu.dimension_semantics<parallel>], iteration_bounds = array<i64: 2>, scalar_prefetch = 0 : i64, scratch_operands = 0 : i64, tpu.core_type = #tpu.core_type<tc>, window_params = [{transform_indices = @transform_0, window_bounds = array<i64: 140>}, {pipeline_mode = #tpu.pipeline_mode<synchronous>, transform_indices = @transform_1, window_bounds = array<i64: 4, 90>}, {transform_indices = @transform_2, window_bounds = array<i64: 1, 4, 4, 90>}, {transform_indices = @transform_3, window_bounds = array<i64: 1, 8, 72>}]} {
    %c0 = arith.constant 0 : index
    %c0_0 = arith.constant 0 : index
    %c0_1 = arith.constant 0 : index
    %c0_2 = arith.constant 0 : index
    %0 = vector.load %arg3[%c0, %c0_0, %c0_1, %c0_2] : memref<1x4x4x90xf32, #tpu.memory_space<vmem>>, vector<1x1x4x90xf32>
    %1 = vector.shape_cast %0 : vector<1x1x4x90xf32> to vector<4x90xf32>
    %c0_3 = arith.constant 0 : index
    %c1 = arith.constant 1 : index
    %c0_4 = arith.constant 0 : index
    %c0_5 = arith.constant 0 : index
    %2 = vector.load %arg3[%c0_3, %c1, %c0_4, %c0_5] : memref<1x4x4x90xf32, #tpu.memory_space<vmem>>, vector<1x1x4x90xf32>
    %3 = vector.shape_cast %2 : vector<1x1x4x90xf32> to vector<4x90xf32>
    %c0_6 = arith.constant 0 : index
    %c2 = arith.constant 2 : index
    %c0_7 = arith.constant 0 : index
    %c0_8 = arith.constant 0 : index
    %4 = vector.load %arg3[%c0_6, %c2, %c0_7, %c0_8] : memref<1x4x4x90xf32, #tpu.memory_space<vmem>>, vector<1x1x4x90xf32>
    %5 = vector.shape_cast %4 : vector<1x1x4x90xf32> to vector<4x90xf32>
    %c0_9 = arith.constant 0 : index
    %c3 = arith.constant 3 : index
    %c0_10 = arith.constant 0 : index
    %c0_11 = arith.constant 0 : index
    %6 = vector.load %arg3[%c0_9, %c3, %c0_10, %c0_11] : memref<1x4x4x90xf32, #tpu.memory_space<vmem>>, vector<1x1x4x90xf32>
    %7 = vector.shape_cast %6 : vector<1x1x4x90xf32> to vector<4x90xf32>
    %c0_12 = arith.constant 0 : index
    %c0_13 = arith.constant 0 : index
    %8 = vector.load %arg2[%c0_12, %c0_13] : memref<4x90xf32, #tpu.memory_space<vmem>>, vector<1x90xf32>
    %9 = vector.shape_cast %8 : vector<1x90xf32> to vector<90xf32>
    %10 = vector.extract_strided_slice %1 {offsets = [0, 0], sizes = [1, 90], strides = [1, 1]} : vector<4x90xf32> to vector<1x90xf32>
    %11 = vector.shape_cast %10 : vector<1x90xf32> to vector<90xf32>
    %c0_14 = arith.constant 0 : index
    %12 = memref.load %arg1[%c0_14] : memref<140xf32, #tpu.memory_space<smem>>
    %13 = vector.broadcast %12 : f32 to vector<90xf32>
    %14 = arith.mulf %11, %13 : vector<90xf32>
    %15 = vector.extract_strided_slice %1 {offsets = [1, 0], sizes = [1, 90], strides = [1, 1]} : vector<4x90xf32> to vector<1x90xf32>
    %16 = vector.shape_cast %15 : vector<1x90xf32> to vector<90xf32>
    %c4 = arith.constant 4 : index
    %17 = memref.load %arg1[%c4] : memref<140xf32, #tpu.memory_space<smem>>
    %18 = vector.broadcast %17 : f32 to vector<90xf32>
    %19 = arith.mulf %16, %18 : vector<90xf32>
    %20 = arith.addf %14, %19 : vector<90xf32>
    %21 = vector.extract_strided_slice %1 {offsets = [2, 0], sizes = [1, 90], strides = [1, 1]} : vector<4x90xf32> to vector<1x90xf32>
    %22 = vector.shape_cast %21 : vector<1x90xf32> to vector<90xf32>
    %c8 = arith.constant 8 : index
    %23 = memref.load %arg1[%c8] : memref<140xf32, #tpu.memory_space<smem>>
    %24 = vector.broadcast %23 : f32 to vector<90xf32>
    %25 = arith.mulf %22, %24 : vector<90xf32>
    %26 = arith.addf %20, %25 : vector<90xf32>
    %27 = vector.extract_strided_slice %1 {offsets = [3, 0], sizes = [1, 90], strides = [1, 1]} : vector<4x90xf32> to vector<1x90xf32>
    %28 = vector.shape_cast %27 : vector<1x90xf32> to vector<90xf32>
    %c12 = arith.constant 12 : index
    %29 = memref.load %arg1[%c12] : memref<140xf32, #tpu.memory_space<smem>>
    %30 = vector.broadcast %29 : f32 to vector<90xf32>
    %31 = arith.mulf %28, %30 : vector<90xf32>
    %32 = arith.addf %26, %31 : vector<90xf32>
    %c16 = arith.constant 16 : index
    %33 = memref.load %arg1[%c16] : memref<140xf32, #tpu.memory_space<smem>>
    %34 = vector.broadcast %33 : f32 to vector<90xf32>
    %35 = arith.addf %32, %34 : vector<90xf32>
    %cst = arith.constant 0.000000e+00 : f32
    %36 = vector.broadcast %cst : f32 to vector<90xf32>
    %37 = arith.maximumf %35, %36 : vector<90xf32>
    %38 = arith.mulf %37, %9 : vector<90xf32>
    %39 = vector.extract_strided_slice %1 {offsets = [0, 0], sizes = [1, 90], strides = [1, 1]} : vector<4x90xf32> to vector<1x90xf32>
    %40 = vector.shape_cast %39 : vector<1x90xf32> to vector<90xf32>
    %c1_15 = arith.constant 1 : index
    %41 = memref.load %arg1[%c1_15] : memref<140xf32, #tpu.memory_space<smem>>
    %42 = vector.broadcast %41 : f32 to vector<90xf32>
    %43 = arith.mulf %40, %42 : vector<90xf32>
    %44 = vector.extract_strided_slice %1 {offsets = [1, 0], sizes = [1, 90], strides = [1, 1]} : vector<4x90xf32> to vector<1x90xf32>
    %45 = vector.shape_cast %44 : vector<1x90xf32> to vector<90xf32>
    %c5 = arith.constant 5 : index
    %46 = memref.load %arg1[%c5] : memref<140xf32, #tpu.memory_space<smem>>
    %47 = vector.broadcast %46 : f32 to vector<90xf32>
    %48 = arith.mulf %45, %47 : vector<90xf32>
    %49 = arith.addf %43, %48 : vector<90xf32>
    %50 = vector.extract_strided_slice %1 {offsets = [2, 0], sizes = [1, 90], strides = [1, 1]} : vector<4x90xf32> to vector<1x90xf32>
    %51 = vector.shape_cast %50 : vector<1x90xf32> to vector<90xf32>
    %c9 = arith.constant 9 : index
    %52 = memref.load %arg1[%c9] : memref<140xf32, #tpu.memory_space<smem>>
    %53 = vector.broadcast %52 : f32 to vector<90xf32>
    %54 = arith.mulf %51, %53 : vector<90xf32>
    %55 = arith.addf %49, %54 : vector<90xf32>
    %56 = vector.extract_strided_slice %1 {offsets = [3, 0], sizes = [1, 90], strides = [1, 1]} : vector<4x90xf32> to vector<1x90xf32>
    %57 = vector.shape_cast %56 : vector<1x90xf32> to vector<90xf32>
    %c13 = arith.constant 13 : index
    %58 = memref.load %arg1[%c13] : memref<140xf32, #tpu.memory_space<smem>>
    %59 = vector.broadcast %58 : f32 to vector<90xf32>
    %60 = arith.mulf %57, %59 : vector<90xf32>
    %61 = arith.addf %55, %60 : vector<90xf32>
    %c17 = arith.constant 17 : index
    %62 = memref.load %arg1[%c17] : memref<140xf32, #tpu.memory_space<smem>>
    %63 = vector.broadcast %62 : f32 to vector<90xf32>
    %64 = arith.addf %61, %63 : vector<90xf32>
    %cst_16 = arith.constant 0.000000e+00 : f32
    %65 = vector.broadcast %cst_16 : f32 to vector<90xf32>
    %66 = arith.maximumf %64, %65 : vector<90xf32>
    %67 = arith.mulf %66, %9 : vector<90xf32>
    %68 = vector.extract_strided_slice %1 {offsets = [0, 0], sizes = [1, 90], strides = [1, 1]} : vector<4x90xf32> to vector<1x90xf32>
    %69 = vector.shape_cast %68 : vector<1x90xf32> to vector<90xf32>
    %c2_17 = arith.constant 2 : index
    %70 = memref.load %arg1[%c2_17] : memref<140xf32, #tpu.memory_space<smem>>
    %71 = vector.broadcast %70 : f32 to vector<90xf32>
    %72 = arith.mulf %69, %71 : vector<90xf32>
    %73 = vector.extract_strided_slice %1 {offsets = [1, 0], sizes = [1, 90], strides = [1, 1]} : vector<4x90xf32> to vector<1x90xf32>
    %74 = vector.shape_cast %73 : vector<1x90xf32> to vector<90xf32>
    %c6 = arith.constant 6 : index
    %75 = memref.load %arg1[%c6] : memref<140xf32, #tpu.memory_space<smem>>
    %76 = vector.broadcast %75 : f32 to vector<90xf32>
    %77 = arith.mulf %74, %76 : vector<90xf32>
    %78 = arith.addf %72, %77 : vector<90xf32>
    %79 = vector.extract_strided_slice %1 {offsets = [2, 0], sizes = [1, 90], strides = [1, 1]} : vector<4x90xf32> to vector<1x90xf32>
    %80 = vector.shape_cast %79 : vector<1x90xf32> to vector<90xf32>
    %c10 = arith.constant 10 : index
    %81 = memref.load %arg1[%c10] : memref<140xf32, #tpu.memory_space<smem>>
    %82 = vector.broadcast %81 : f32 to vector<90xf32>
    %83 = arith.mulf %80, %82 : vector<90xf32>
    %84 = arith.addf %78, %83 : vector<90xf32>
    %85 = vector.extract_strided_slice %1 {offsets = [3, 0], sizes = [1, 90], strides = [1, 1]} : vector<4x90xf32> to vector<1x90xf32>
    %86 = vector.shape_cast %85 : vector<1x90xf32> to vector<90xf32>
    %c14 = arith.constant 14 : index
    %87 = memref.load %arg1[%c14] : memref<140xf32, #tpu.memory_space<smem>>
    %88 = vector.broadcast %87 : f32 to vector<90xf32>
    %89 = arith.mulf %86, %88 : vector<90xf32>
    %90 = arith.addf %84, %89 : vector<90xf32>
    %c18 = arith.constant 18 : index
    %91 = memref.load %arg1[%c18] : memref<140xf32, #tpu.memory_space<smem>>
    %92 = vector.broadcast %91 : f32 to vector<90xf32>
    %93 = arith.addf %90, %92 : vector<90xf32>
    %cst_18 = arith.constant 0.000000e+00 : f32
    %94 = vector.broadcast %cst_18 : f32 to vector<90xf32>
    %95 = arith.maximumf %93, %94 : vector<90xf32>
    %96 = arith.mulf %95, %9 : vector<90xf32>
    %97 = vector.extract_strided_slice %1 {offsets = [0, 0], sizes = [1, 90], strides = [1, 1]} : vector<4x90xf32> to vector<1x90xf32>
    %98 = vector.shape_cast %97 : vector<1x90xf32> to vector<90xf32>
    %c3_19 = arith.constant 3 : index
    %99 = memref.load %arg1[%c3_19] : memref<140xf32, #tpu.memory_space<smem>>
    %100 = vector.broadcast %99 : f32 to vector<90xf32>
    %101 = arith.mulf %98, %100 : vector<90xf32>
    %102 = vector.extract_strided_slice %1 {offsets = [1, 0], sizes = [1, 90], strides = [1, 1]} : vector<4x90xf32> to vector<1x90xf32>
    %103 = vector.shape_cast %102 : vector<1x90xf32> to vector<90xf32>
    %c7 = arith.constant 7 : index
    %104 = memref.load %arg1[%c7] : memref<140xf32, #tpu.memory_space<smem>>
    %105 = vector.broadcast %104 : f32 to vector<90xf32>
    %106 = arith.mulf %103, %105 : vector<90xf32>
    %107 = arith.addf %101, %106 : vector<90xf32>
    %108 = vector.extract_strided_slice %1 {offsets = [2, 0], sizes = [1, 90], strides = [1, 1]} : vector<4x90xf32> to vector<1x90xf32>
    %109 = vector.shape_cast %108 : vector<1x90xf32> to vector<90xf32>
    %c11 = arith.constant 11 : index
    %110 = memref.load %arg1[%c11] : memref<140xf32, #tpu.memory_space<smem>>
    %111 = vector.broadcast %110 : f32 to vector<90xf32>
    %112 = arith.mulf %109, %111 : vector<90xf32>
    %113 = arith.addf %107, %112 : vector<90xf32>
    %114 = vector.extract_strided_slice %1 {offsets = [3, 0], sizes = [1, 90], strides = [1, 1]} : vector<4x90xf32> to vector<1x90xf32>
    %115 = vector.shape_cast %114 : vector<1x90xf32> to vector<90xf32>
    %c15 = arith.constant 15 : index
    %116 = memref.load %arg1[%c15] : memref<140xf32, #tpu.memory_space<smem>>
    %117 = vector.broadcast %116 : f32 to vector<90xf32>
    %118 = arith.mulf %115, %117 : vector<90xf32>
    %119 = arith.addf %113, %118 : vector<90xf32>
    %c19 = arith.constant 19 : index
    %120 = memref.load %arg1[%c19] : memref<140xf32, #tpu.memory_space<smem>>
    %121 = vector.broadcast %120 : f32 to vector<90xf32>
    %122 = arith.addf %119, %121 : vector<90xf32>
    %cst_20 = arith.constant 0.000000e+00 : f32
    %123 = vector.broadcast %cst_20 : f32 to vector<90xf32>
    %124 = arith.maximumf %122, %123 : vector<90xf32>
    %125 = arith.mulf %124, %9 : vector<90xf32>
    %c1_21 = arith.constant 1 : index
    %c0_22 = arith.constant 0 : index
    %126 = vector.load %arg2[%c1_21, %c0_22] : memref<4x90xf32, #tpu.memory_space<vmem>>, vector<1x90xf32>
    %127 = vector.shape_cast %126 : vector<1x90xf32> to vector<90xf32>
    %128 = vector.extract_strided_slice %3 {offsets = [0, 0], sizes = [1, 90], strides = [1, 1]} : vector<4x90xf32> to vector<1x90xf32>
    %129 = vector.shape_cast %128 : vector<1x90xf32> to vector<90xf32>
    %c0_23 = arith.constant 0 : index
    %130 = memref.load %arg1[%c0_23] : memref<140xf32, #tpu.memory_space<smem>>
    %131 = vector.broadcast %130 : f32 to vector<90xf32>
    %132 = arith.mulf %129, %131 : vector<90xf32>
    %133 = vector.extract_strided_slice %3 {offsets = [1, 0], sizes = [1, 90], strides = [1, 1]} : vector<4x90xf32> to vector<1x90xf32>
    %134 = vector.shape_cast %133 : vector<1x90xf32> to vector<90xf32>
    %c4_24 = arith.constant 4 : index
    %135 = memref.load %arg1[%c4_24] : memref<140xf32, #tpu.memory_space<smem>>
    %136 = vector.broadcast %135 : f32 to vector<90xf32>
    %137 = arith.mulf %134, %136 : vector<90xf32>
    %138 = arith.addf %132, %137 : vector<90xf32>
    %139 = vector.extract_strided_slice %3 {offsets = [2, 0], sizes = [1, 90], strides = [1, 1]} : vector<4x90xf32> to vector<1x90xf32>
    %140 = vector.shape_cast %139 : vector<1x90xf32> to vector<90xf32>
    %c8_25 = arith.constant 8 : index
    %141 = memref.load %arg1[%c8_25] : memref<140xf32, #tpu.memory_space<smem>>
    %142 = vector.broadcast %141 : f32 to vector<90xf32>
    %143 = arith.mulf %140, %142 : vector<90xf32>
    %144 = arith.addf %138, %143 : vector<90xf32>
    %145 = vector.extract_strided_slice %3 {offsets = [3, 0], sizes = [1, 90], strides = [1, 1]} : vector<4x90xf32> to vector<1x90xf32>
    %146 = vector.shape_cast %145 : vector<1x90xf32> to vector<90xf32>
    %c12_26 = arith.constant 12 : index
    %147 = memref.load %arg1[%c12_26] : memref<140xf32, #tpu.memory_space<smem>>
    %148 = vector.broadcast %147 : f32 to vector<90xf32>
    %149 = arith.mulf %146, %148 : vector<90xf32>
    %150 = arith.addf %144, %149 : vector<90xf32>
    %c16_27 = arith.constant 16 : index
    %151 = memref.load %arg1[%c16_27] : memref<140xf32, #tpu.memory_space<smem>>
    %152 = vector.broadcast %151 : f32 to vector<90xf32>
    %153 = arith.addf %150, %152 : vector<90xf32>
    %cst_28 = arith.constant 0.000000e+00 : f32
    %154 = vector.broadcast %cst_28 : f32 to vector<90xf32>
    %155 = arith.maximumf %153, %154 : vector<90xf32>
    %156 = arith.mulf %155, %127 : vector<90xf32>
    %157 = vector.extract_strided_slice %3 {offsets = [0, 0], sizes = [1, 90], strides = [1, 1]} : vector<4x90xf32> to vector<1x90xf32>
    %158 = vector.shape_cast %157 : vector<1x90xf32> to vector<90xf32>
    %c1_29 = arith.constant 1 : index
    %159 = memref.load %arg1[%c1_29] : memref<140xf32, #tpu.memory_space<smem>>
    %160 = vector.broadcast %159 : f32 to vector<90xf32>
    %161 = arith.mulf %158, %160 : vector<90xf32>
    %162 = vector.extract_strided_slice %3 {offsets = [1, 0], sizes = [1, 90], strides = [1, 1]} : vector<4x90xf32> to vector<1x90xf32>
    %163 = vector.shape_cast %162 : vector<1x90xf32> to vector<90xf32>
    %c5_30 = arith.constant 5 : index
    %164 = memref.load %arg1[%c5_30] : memref<140xf32, #tpu.memory_space<smem>>
    %165 = vector.broadcast %164 : f32 to vector<90xf32>
    %166 = arith.mulf %163, %165 : vector<90xf32>
    %167 = arith.addf %161, %166 : vector<90xf32>
    %168 = vector.extract_strided_slice %3 {offsets = [2, 0], sizes = [1, 90], strides = [1, 1]} : vector<4x90xf32> to vector<1x90xf32>
    %169 = vector.shape_cast %168 : vector<1x90xf32> to vector<90xf32>
    %c9_31 = arith.constant 9 : index
    %170 = memref.load %arg1[%c9_31] : memref<140xf32, #tpu.memory_space<smem>>
    %171 = vector.broadcast %170 : f32 to vector<90xf32>
    %172 = arith.mulf %169, %171 : vector<90xf32>
    %173 = arith.addf %167, %172 : vector<90xf32>
    %174 = vector.extract_strided_slice %3 {offsets = [3, 0], sizes = [1, 90], strides = [1, 1]} : vector<4x90xf32> to vector<1x90xf32>
    %175 = vector.shape_cast %174 : vector<1x90xf32> to vector<90xf32>
    %c13_32 = arith.constant 13 : index
    %176 = memref.load %arg1[%c13_32] : memref<140xf32, #tpu.memory_space<smem>>
    %177 = vector.broadcast %176 : f32 to vector<90xf32>
    %178 = arith.mulf %175, %177 : vector<90xf32>
    %179 = arith.addf %173, %178 : vector<90xf32>
    %c17_33 = arith.constant 17 : index
    %180 = memref.load %arg1[%c17_33] : memref<140xf32, #tpu.memory_space<smem>>
    %181 = vector.broadcast %180 : f32 to vector<90xf32>
    %182 = arith.addf %179, %181 : vector<90xf32>
    %cst_34 = arith.constant 0.000000e+00 : f32
    %183 = vector.broadcast %cst_34 : f32 to vector<90xf32>
    %184 = arith.maximumf %182, %183 : vector<90xf32>
    %185 = arith.mulf %184, %127 : vector<90xf32>
    %186 = vector.extract_strided_slice %3 {offsets = [0, 0], sizes = [1, 90], strides = [1, 1]} : vector<4x90xf32> to vector<1x90xf32>
    %187 = vector.shape_cast %186 : vector<1x90xf32> to vector<90xf32>
    %c2_35 = arith.constant 2 : index
    %188 = memref.load %arg1[%c2_35] : memref<140xf32, #tpu.memory_space<smem>>
    %189 = vector.broadcast %188 : f32 to vector<90xf32>
    %190 = arith.mulf %187, %189 : vector<90xf32>
    %191 = vector.extract_strided_slice %3 {offsets = [1, 0], sizes = [1, 90], strides = [1, 1]} : vector<4x90xf32> to vector<1x90xf32>
    %192 = vector.shape_cast %191 : vector<1x90xf32> to vector<90xf32>
    %c6_36 = arith.constant 6 : index
    %193 = memref.load %arg1[%c6_36] : memref<140xf32, #tpu.memory_space<smem>>
    %194 = vector.broadcast %193 : f32 to vector<90xf32>
    %195 = arith.mulf %192, %194 : vector<90xf32>
    %196 = arith.addf %190, %195 : vector<90xf32>
    %197 = vector.extract_strided_slice %3 {offsets = [2, 0], sizes = [1, 90], strides = [1, 1]} : vector<4x90xf32> to vector<1x90xf32>
    %198 = vector.shape_cast %197 : vector<1x90xf32> to vector<90xf32>
    %c10_37 = arith.constant 10 : index
    %199 = memref.load %arg1[%c10_37] : memref<140xf32, #tpu.memory_space<smem>>
    %200 = vector.broadcast %199 : f32 to vector<90xf32>
    %201 = arith.mulf %198, %200 : vector<90xf32>
    %202 = arith.addf %196, %201 : vector<90xf32>
    %203 = vector.extract_strided_slice %3 {offsets = [3, 0], sizes = [1, 90], strides = [1, 1]} : vector<4x90xf32> to vector<1x90xf32>
    %204 = vector.shape_cast %203 : vector<1x90xf32> to vector<90xf32>
    %c14_38 = arith.constant 14 : index
    %205 = memref.load %arg1[%c14_38] : memref<140xf32, #tpu.memory_space<smem>>
    %206 = vector.broadcast %205 : f32 to vector<90xf32>
    %207 = arith.mulf %204, %206 : vector<90xf32>
    %208 = arith.addf %202, %207 : vector<90xf32>
    %c18_39 = arith.constant 18 : index
    %209 = memref.load %arg1[%c18_39] : memref<140xf32, #tpu.memory_space<smem>>
    %210 = vector.broadcast %209 : f32 to vector<90xf32>
    %211 = arith.addf %208, %210 : vector<90xf32>
    %cst_40 = arith.constant 0.000000e+00 : f32
    %212 = vector.broadcast %cst_40 : f32 to vector<90xf32>
    %213 = arith.maximumf %211, %212 : vector<90xf32>
    %214 = arith.mulf %213, %127 : vector<90xf32>
    %215 = vector.extract_strided_slice %3 {offsets = [0, 0], sizes = [1, 90], strides = [1, 1]} : vector<4x90xf32> to vector<1x90xf32>
    %216 = vector.shape_cast %215 : vector<1x90xf32> to vector<90xf32>
    %c3_41 = arith.constant 3 : index
    %217 = memref.load %arg1[%c3_41] : memref<140xf32, #tpu.memory_space<smem>>
    %218 = vector.broadcast %217 : f32 to vector<90xf32>
    %219 = arith.mulf %216, %218 : vector<90xf32>
    %220 = vector.extract_strided_slice %3 {offsets = [1, 0], sizes = [1, 90], strides = [1, 1]} : vector<4x90xf32> to vector<1x90xf32>
    %221 = vector.shape_cast %220 : vector<1x90xf32> to vector<90xf32>
    %c7_42 = arith.constant 7 : index
    %222 = memref.load %arg1[%c7_42] : memref<140xf32, #tpu.memory_space<smem>>
    %223 = vector.broadcast %222 : f32 to vector<90xf32>
    %224 = arith.mulf %221, %223 : vector<90xf32>
    %225 = arith.addf %219, %224 : vector<90xf32>
    %226 = vector.extract_strided_slice %3 {offsets = [2, 0], sizes = [1, 90], strides = [1, 1]} : vector<4x90xf32> to vector<1x90xf32>
    %227 = vector.shape_cast %226 : vector<1x90xf32> to vector<90xf32>
    %c11_43 = arith.constant 11 : index
    %228 = memref.load %arg1[%c11_43] : memref<140xf32, #tpu.memory_space<smem>>
    %229 = vector.broadcast %228 : f32 to vector<90xf32>
    %230 = arith.mulf %227, %229 : vector<90xf32>
    %231 = arith.addf %225, %230 : vector<90xf32>
    %232 = vector.extract_strided_slice %3 {offsets = [3, 0], sizes = [1, 90], strides = [1, 1]} : vector<4x90xf32> to vector<1x90xf32>
    %233 = vector.shape_cast %232 : vector<1x90xf32> to vector<90xf32>
    %c15_44 = arith.constant 15 : index
    %234 = memref.load %arg1[%c15_44] : memref<140xf32, #tpu.memory_space<smem>>
    %235 = vector.broadcast %234 : f32 to vector<90xf32>
    %236 = arith.mulf %233, %235 : vector<90xf32>
    %237 = arith.addf %231, %236 : vector<90xf32>
    %c19_45 = arith.constant 19 : index
    %238 = memref.load %arg1[%c19_45] : memref<140xf32, #tpu.memory_space<smem>>
    %239 = vector.broadcast %238 : f32 to vector<90xf32>
    %240 = arith.addf %237, %239 : vector<90xf32>
    %cst_46 = arith.constant 0.000000e+00 : f32
    %241 = vector.broadcast %cst_46 : f32 to vector<90xf32>
    %242 = arith.maximumf %240, %241 : vector<90xf32>
    %243 = arith.mulf %242, %127 : vector<90xf32>
    %c2_47 = arith.constant 2 : index
    %c0_48 = arith.constant 0 : index
    %244 = vector.load %arg2[%c2_47, %c0_48] : memref<4x90xf32, #tpu.memory_space<vmem>>, vector<1x90xf32>
    %245 = vector.shape_cast %244 : vector<1x90xf32> to vector<90xf32>
    %246 = vector.extract_strided_slice %5 {offsets = [0, 0], sizes = [1, 90], strides = [1, 1]} : vector<4x90xf32> to vector<1x90xf32>
    %247 = vector.shape_cast %246 : vector<1x90xf32> to vector<90xf32>
    %c0_49 = arith.constant 0 : index
    %248 = memref.load %arg1[%c0_49] : memref<140xf32, #tpu.memory_space<smem>>
    %249 = vector.broadcast %248 : f32 to vector<90xf32>
    %250 = arith.mulf %247, %249 : vector<90xf32>
    %251 = vector.extract_strided_slice %5 {offsets = [1, 0], sizes = [1, 90], strides = [1, 1]} : vector<4x90xf32> to vector<1x90xf32>
    %252 = vector.shape_cast %251 : vector<1x90xf32> to vector<90xf32>
    %c4_50 = arith.constant 4 : index
    %253 = memref.load %arg1[%c4_50] : memref<140xf32, #tpu.memory_space<smem>>
    %254 = vector.broadcast %253 : f32 to vector<90xf32>
    %255 = arith.mulf %252, %254 : vector<90xf32>
    %256 = arith.addf %250, %255 : vector<90xf32>
    %257 = vector.extract_strided_slice %5 {offsets = [2, 0], sizes = [1, 90], strides = [1, 1]} : vector<4x90xf32> to vector<1x90xf32>
    %258 = vector.shape_cast %257 : vector<1x90xf32> to vector<90xf32>
    %c8_51 = arith.constant 8 : index
    %259 = memref.load %arg1[%c8_51] : memref<140xf32, #tpu.memory_space<smem>>
    %260 = vector.broadcast %259 : f32 to vector<90xf32>
    %261 = arith.mulf %258, %260 : vector<90xf32>
    %262 = arith.addf %256, %261 : vector<90xf32>
    %263 = vector.extract_strided_slice %5 {offsets = [3, 0], sizes = [1, 90], strides = [1, 1]} : vector<4x90xf32> to vector<1x90xf32>
    %264 = vector.shape_cast %263 : vector<1x90xf32> to vector<90xf32>
    %c12_52 = arith.constant 12 : index
    %265 = memref.load %arg1[%c12_52] : memref<140xf32, #tpu.memory_space<smem>>
    %266 = vector.broadcast %265 : f32 to vector<90xf32>
    %267 = arith.mulf %264, %266 : vector<90xf32>
    %268 = arith.addf %262, %267 : vector<90xf32>
    %c16_53 = arith.constant 16 : index
    %269 = memref.load %arg1[%c16_53] : memref<140xf32, #tpu.memory_space<smem>>
    %270 = vector.broadcast %269 : f32 to vector<90xf32>
    %271 = arith.addf %268, %270 : vector<90xf32>
    %cst_54 = arith.constant 0.000000e+00 : f32
    %272 = vector.broadcast %cst_54 : f32 to vector<90xf32>
    %273 = arith.maximumf %271, %272 : vector<90xf32>
    %274 = arith.mulf %273, %245 : vector<90xf32>
    %275 = vector.extract_strided_slice %5 {offsets = [0, 0], sizes = [1, 90], strides = [1, 1]} : vector<4x90xf32> to vector<1x90xf32>
    %276 = vector.shape_cast %275 : vector<1x90xf32> to vector<90xf32>
    %c1_55 = arith.constant 1 : index
    %277 = memref.load %arg1[%c1_55] : memref<140xf32, #tpu.memory_space<smem>>
    %278 = vector.broadcast %277 : f32 to vector<90xf32>
    %279 = arith.mulf %276, %278 : vector<90xf32>
    %280 = vector.extract_strided_slice %5 {offsets = [1, 0], sizes = [1, 90], strides = [1, 1]} : vector<4x90xf32> to vector<1x90xf32>
    %281 = vector.shape_cast %280 : vector<1x90xf32> to vector<90xf32>
    %c5_56 = arith.constant 5 : index
    %282 = memref.load %arg1[%c5_56] : memref<140xf32, #tpu.memory_space<smem>>
    %283 = vector.broadcast %282 : f32 to vector<90xf32>
    %284 = arith.mulf %281, %283 : vector<90xf32>
    %285 = arith.addf %279, %284 : vector<90xf32>
    %286 = vector.extract_strided_slice %5 {offsets = [2, 0], sizes = [1, 90], strides = [1, 1]} : vector<4x90xf32> to vector<1x90xf32>
    %287 = vector.shape_cast %286 : vector<1x90xf32> to vector<90xf32>
    %c9_57 = arith.constant 9 : index
    %288 = memref.load %arg1[%c9_57] : memref<140xf32, #tpu.memory_space<smem>>
    %289 = vector.broadcast %288 : f32 to vector<90xf32>
    %290 = arith.mulf %287, %289 : vector<90xf32>
    %291 = arith.addf %285, %290 : vector<90xf32>
    %292 = vector.extract_strided_slice %5 {offsets = [3, 0], sizes = [1, 90], strides = [1, 1]} : vector<4x90xf32> to vector<1x90xf32>
    %293 = vector.shape_cast %292 : vector<1x90xf32> to vector<90xf32>
    %c13_58 = arith.constant 13 : index
    %294 = memref.load %arg1[%c13_58] : memref<140xf32, #tpu.memory_space<smem>>
    %295 = vector.broadcast %294 : f32 to vector<90xf32>
    %296 = arith.mulf %293, %295 : vector<90xf32>
    %297 = arith.addf %291, %296 : vector<90xf32>
    %c17_59 = arith.constant 17 : index
    %298 = memref.load %arg1[%c17_59] : memref<140xf32, #tpu.memory_space<smem>>
    %299 = vector.broadcast %298 : f32 to vector<90xf32>
    %300 = arith.addf %297, %299 : vector<90xf32>
    %cst_60 = arith.constant 0.000000e+00 : f32
    %301 = vector.broadcast %cst_60 : f32 to vector<90xf32>
    %302 = arith.maximumf %300, %301 : vector<90xf32>
    %303 = arith.mulf %302, %245 : vector<90xf32>
    %304 = vector.extract_strided_slice %5 {offsets = [0, 0], sizes = [1, 90], strides = [1, 1]} : vector<4x90xf32> to vector<1x90xf32>
    %305 = vector.shape_cast %304 : vector<1x90xf32> to vector<90xf32>
    %c2_61 = arith.constant 2 : index
    %306 = memref.load %arg1[%c2_61] : memref<140xf32, #tpu.memory_space<smem>>
    %307 = vector.broadcast %306 : f32 to vector<90xf32>
    %308 = arith.mulf %305, %307 : vector<90xf32>
    %309 = vector.extract_strided_slice %5 {offsets = [1, 0], sizes = [1, 90], strides = [1, 1]} : vector<4x90xf32> to vector<1x90xf32>
    %310 = vector.shape_cast %309 : vector<1x90xf32> to vector<90xf32>
    %c6_62 = arith.constant 6 : index
    %311 = memref.load %arg1[%c6_62] : memref<140xf32, #tpu.memory_space<smem>>
    %312 = vector.broadcast %311 : f32 to vector<90xf32>
    %313 = arith.mulf %310, %312 : vector<90xf32>
    %314 = arith.addf %308, %313 : vector<90xf32>
    %315 = vector.extract_strided_slice %5 {offsets = [2, 0], sizes = [1, 90], strides = [1, 1]} : vector<4x90xf32> to vector<1x90xf32>
    %316 = vector.shape_cast %315 : vector<1x90xf32> to vector<90xf32>
    %c10_63 = arith.constant 10 : index
    %317 = memref.load %arg1[%c10_63] : memref<140xf32, #tpu.memory_space<smem>>
    %318 = vector.broadcast %317 : f32 to vector<90xf32>
    %319 = arith.mulf %316, %318 : vector<90xf32>
    %320 = arith.addf %314, %319 : vector<90xf32>
    %321 = vector.extract_strided_slice %5 {offsets = [3, 0], sizes = [1, 90], strides = [1, 1]} : vector<4x90xf32> to vector<1x90xf32>
    %322 = vector.shape_cast %321 : vector<1x90xf32> to vector<90xf32>
    %c14_64 = arith.constant 14 : index
    %323 = memref.load %arg1[%c14_64] : memref<140xf32, #tpu.memory_space<smem>>
    %324 = vector.broadcast %323 : f32 to vector<90xf32>
    %325 = arith.mulf %322, %324 : vector<90xf32>
    %326 = arith.addf %320, %325 : vector<90xf32>
    %c18_65 = arith.constant 18 : index
    %327 = memref.load %arg1[%c18_65] : memref<140xf32, #tpu.memory_space<smem>>
    %328 = vector.broadcast %327 : f32 to vector<90xf32>
    %329 = arith.addf %326, %328 : vector<90xf32>
    %cst_66 = arith.constant 0.000000e+00 : f32
    %330 = vector.broadcast %cst_66 : f32 to vector<90xf32>
    %331 = arith.maximumf %329, %330 : vector<90xf32>
    %332 = arith.mulf %331, %245 : vector<90xf32>
    %333 = vector.extract_strided_slice %5 {offsets = [0, 0], sizes = [1, 90], strides = [1, 1]} : vector<4x90xf32> to vector<1x90xf32>
    %334 = vector.shape_cast %333 : vector<1x90xf32> to vector<90xf32>
    %c3_67 = arith.constant 3 : index
    %335 = memref.load %arg1[%c3_67] : memref<140xf32, #tpu.memory_space<smem>>
    %336 = vector.broadcast %335 : f32 to vector<90xf32>
    %337 = arith.mulf %334, %336 : vector<90xf32>
    %338 = vector.extract_strided_slice %5 {offsets = [1, 0], sizes = [1, 90], strides = [1, 1]} : vector<4x90xf32> to vector<1x90xf32>
    %339 = vector.shape_cast %338 : vector<1x90xf32> to vector<90xf32>
    %c7_68 = arith.constant 7 : index
    %340 = memref.load %arg1[%c7_68] : memref<140xf32, #tpu.memory_space<smem>>
    %341 = vector.broadcast %340 : f32 to vector<90xf32>
    %342 = arith.mulf %339, %341 : vector<90xf32>
    %343 = arith.addf %337, %342 : vector<90xf32>
    %344 = vector.extract_strided_slice %5 {offsets = [2, 0], sizes = [1, 90], strides = [1, 1]} : vector<4x90xf32> to vector<1x90xf32>
    %345 = vector.shape_cast %344 : vector<1x90xf32> to vector<90xf32>
    %c11_69 = arith.constant 11 : index
    %346 = memref.load %arg1[%c11_69] : memref<140xf32, #tpu.memory_space<smem>>
    %347 = vector.broadcast %346 : f32 to vector<90xf32>
    %348 = arith.mulf %345, %347 : vector<90xf32>
    %349 = arith.addf %343, %348 : vector<90xf32>
    %350 = vector.extract_strided_slice %5 {offsets = [3, 0], sizes = [1, 90], strides = [1, 1]} : vector<4x90xf32> to vector<1x90xf32>
    %351 = vector.shape_cast %350 : vector<1x90xf32> to vector<90xf32>
    %c15_70 = arith.constant 15 : index
    %352 = memref.load %arg1[%c15_70] : memref<140xf32, #tpu.memory_space<smem>>
    %353 = vector.broadcast %352 : f32 to vector<90xf32>
    %354 = arith.mulf %351, %353 : vector<90xf32>
    %355 = arith.addf %349, %354 : vector<90xf32>
    %c19_71 = arith.constant 19 : index
    %356 = memref.load %arg1[%c19_71] : memref<140xf32, #tpu.memory_space<smem>>
    %357 = vector.broadcast %356 : f32 to vector<90xf32>
    %358 = arith.addf %355, %357 : vector<90xf32>
    %cst_72 = arith.constant 0.000000e+00 : f32
    %359 = vector.broadcast %cst_72 : f32 to vector<90xf32>
    %360 = arith.maximumf %358, %359 : vector<90xf32>
    %361 = arith.mulf %360, %245 : vector<90xf32>
    %c3_73 = arith.constant 3 : index
    %c0_74 = arith.constant 0 : index
    %362 = vector.load %arg2[%c3_73, %c0_74] : memref<4x90xf32, #tpu.memory_space<vmem>>, vector<1x90xf32>
    %363 = vector.shape_cast %362 : vector<1x90xf32> to vector<90xf32>
    %364 = vector.extract_strided_slice %7 {offsets = [0, 0], sizes = [1, 90], strides = [1, 1]} : vector<4x90xf32> to vector<1x90xf32>
    %365 = vector.shape_cast %364 : vector<1x90xf32> to vector<90xf32>
    %c0_75 = arith.constant 0 : index
    %366 = memref.load %arg1[%c0_75] : memref<140xf32, #tpu.memory_space<smem>>
    %367 = vector.broadcast %366 : f32 to vector<90xf32>
    %368 = arith.mulf %365, %367 : vector<90xf32>
    %369 = vector.extract_strided_slice %7 {offsets = [1, 0], sizes = [1, 90], strides = [1, 1]} : vector<4x90xf32> to vector<1x90xf32>
    %370 = vector.shape_cast %369 : vector<1x90xf32> to vector<90xf32>
    %c4_76 = arith.constant 4 : index
    %371 = memref.load %arg1[%c4_76] : memref<140xf32, #tpu.memory_space<smem>>
    %372 = vector.broadcast %371 : f32 to vector<90xf32>
    %373 = arith.mulf %370, %372 : vector<90xf32>
    %374 = arith.addf %368, %373 : vector<90xf32>
    %375 = vector.extract_strided_slice %7 {offsets = [2, 0], sizes = [1, 90], strides = [1, 1]} : vector<4x90xf32> to vector<1x90xf32>
    %376 = vector.shape_cast %375 : vector<1x90xf32> to vector<90xf32>
    %c8_77 = arith.constant 8 : index
    %377 = memref.load %arg1[%c8_77] : memref<140xf32, #tpu.memory_space<smem>>
    %378 = vector.broadcast %377 : f32 to vector<90xf32>
    %379 = arith.mulf %376, %378 : vector<90xf32>
    %380 = arith.addf %374, %379 : vector<90xf32>
    %381 = vector.extract_strided_slice %7 {offsets = [3, 0], sizes = [1, 90], strides = [1, 1]} : vector<4x90xf32> to vector<1x90xf32>
    %382 = vector.shape_cast %381 : vector<1x90xf32> to vector<90xf32>
    %c12_78 = arith.constant 12 : index
    %383 = memref.load %arg1[%c12_78] : memref<140xf32, #tpu.memory_space<smem>>
    %384 = vector.broadcast %383 : f32 to vector<90xf32>
    %385 = arith.mulf %382, %384 : vector<90xf32>
    %386 = arith.addf %380, %385 : vector<90xf32>
    %c16_79 = arith.constant 16 : index
    %387 = memref.load %arg1[%c16_79] : memref<140xf32, #tpu.memory_space<smem>>
    %388 = vector.broadcast %387 : f32 to vector<90xf32>
    %389 = arith.addf %386, %388 : vector<90xf32>
    %cst_80 = arith.constant 0.000000e+00 : f32
    %390 = vector.broadcast %cst_80 : f32 to vector<90xf32>
    %391 = arith.maximumf %389, %390 : vector<90xf32>
    %392 = arith.mulf %391, %363 : vector<90xf32>
    %393 = vector.extract_strided_slice %7 {offsets = [0, 0], sizes = [1, 90], strides = [1, 1]} : vector<4x90xf32> to vector<1x90xf32>
    %394 = vector.shape_cast %393 : vector<1x90xf32> to vector<90xf32>
    %c1_81 = arith.constant 1 : index
    %395 = memref.load %arg1[%c1_81] : memref<140xf32, #tpu.memory_space<smem>>
    %396 = vector.broadcast %395 : f32 to vector<90xf32>
    %397 = arith.mulf %394, %396 : vector<90xf32>
    %398 = vector.extract_strided_slice %7 {offsets = [1, 0], sizes = [1, 90], strides = [1, 1]} : vector<4x90xf32> to vector<1x90xf32>
    %399 = vector.shape_cast %398 : vector<1x90xf32> to vector<90xf32>
    %c5_82 = arith.constant 5 : index
    %400 = memref.load %arg1[%c5_82] : memref<140xf32, #tpu.memory_space<smem>>
    %401 = vector.broadcast %400 : f32 to vector<90xf32>
    %402 = arith.mulf %399, %401 : vector<90xf32>
    %403 = arith.addf %397, %402 : vector<90xf32>
    %404 = vector.extract_strided_slice %7 {offsets = [2, 0], sizes = [1, 90], strides = [1, 1]} : vector<4x90xf32> to vector<1x90xf32>
    %405 = vector.shape_cast %404 : vector<1x90xf32> to vector<90xf32>
    %c9_83 = arith.constant 9 : index
    %406 = memref.load %arg1[%c9_83] : memref<140xf32, #tpu.memory_space<smem>>
    %407 = vector.broadcast %406 : f32 to vector<90xf32>
    %408 = arith.mulf %405, %407 : vector<90xf32>
    %409 = arith.addf %403, %408 : vector<90xf32>
    %410 = vector.extract_strided_slice %7 {offsets = [3, 0], sizes = [1, 90], strides = [1, 1]} : vector<4x90xf32> to vector<1x90xf32>
    %411 = vector.shape_cast %410 : vector<1x90xf32> to vector<90xf32>
    %c13_84 = arith.constant 13 : index
    %412 = memref.load %arg1[%c13_84] : memref<140xf32, #tpu.memory_space<smem>>
    %413 = vector.broadcast %412 : f32 to vector<90xf32>
    %414 = arith.mulf %411, %413 : vector<90xf32>
    %415 = arith.addf %409, %414 : vector<90xf32>
    %c17_85 = arith.constant 17 : index
    %416 = memref.load %arg1[%c17_85] : memref<140xf32, #tpu.memory_space<smem>>
    %417 = vector.broadcast %416 : f32 to vector<90xf32>
    %418 = arith.addf %415, %417 : vector<90xf32>
    %cst_86 = arith.constant 0.000000e+00 : f32
    %419 = vector.broadcast %cst_86 : f32 to vector<90xf32>
    %420 = arith.maximumf %418, %419 : vector<90xf32>
    %421 = arith.mulf %420, %363 : vector<90xf32>
    %422 = vector.extract_strided_slice %7 {offsets = [0, 0], sizes = [1, 90], strides = [1, 1]} : vector<4x90xf32> to vector<1x90xf32>
    %423 = vector.shape_cast %422 : vector<1x90xf32> to vector<90xf32>
    %c2_87 = arith.constant 2 : index
    %424 = memref.load %arg1[%c2_87] : memref<140xf32, #tpu.memory_space<smem>>
    %425 = vector.broadcast %424 : f32 to vector<90xf32>
    %426 = arith.mulf %423, %425 : vector<90xf32>
    %427 = vector.extract_strided_slice %7 {offsets = [1, 0], sizes = [1, 90], strides = [1, 1]} : vector<4x90xf32> to vector<1x90xf32>
    %428 = vector.shape_cast %427 : vector<1x90xf32> to vector<90xf32>
    %c6_88 = arith.constant 6 : index
    %429 = memref.load %arg1[%c6_88] : memref<140xf32, #tpu.memory_space<smem>>
    %430 = vector.broadcast %429 : f32 to vector<90xf32>
    %431 = arith.mulf %428, %430 : vector<90xf32>
    %432 = arith.addf %426, %431 : vector<90xf32>
    %433 = vector.extract_strided_slice %7 {offsets = [2, 0], sizes = [1, 90], strides = [1, 1]} : vector<4x90xf32> to vector<1x90xf32>
    %434 = vector.shape_cast %433 : vector<1x90xf32> to vector<90xf32>
    %c10_89 = arith.constant 10 : index
    %435 = memref.load %arg1[%c10_89] : memref<140xf32, #tpu.memory_space<smem>>
    %436 = vector.broadcast %435 : f32 to vector<90xf32>
    %437 = arith.mulf %434, %436 : vector<90xf32>
    %438 = arith.addf %432, %437 : vector<90xf32>
    %439 = vector.extract_strided_slice %7 {offsets = [3, 0], sizes = [1, 90], strides = [1, 1]} : vector<4x90xf32> to vector<1x90xf32>
    %440 = vector.shape_cast %439 : vector<1x90xf32> to vector<90xf32>
    %c14_90 = arith.constant 14 : index
    %441 = memref.load %arg1[%c14_90] : memref<140xf32, #tpu.memory_space<smem>>
    %442 = vector.broadcast %441 : f32 to vector<90xf32>
    %443 = arith.mulf %440, %442 : vector<90xf32>
    %444 = arith.addf %438, %443 : vector<90xf32>
    %c18_91 = arith.constant 18 : index
    %445 = memref.load %arg1[%c18_91] : memref<140xf32, #tpu.memory_space<smem>>
    %446 = vector.broadcast %445 : f32 to vector<90xf32>
    %447 = arith.addf %444, %446 : vector<90xf32>
    %cst_92 = arith.constant 0.000000e+00 : f32
    %448 = vector.broadcast %cst_92 : f32 to vector<90xf32>
    %449 = arith.maximumf %447, %448 : vector<90xf32>
    %450 = arith.mulf %449, %363 : vector<90xf32>
    %451 = vector.extract_strided_slice %7 {offsets = [0, 0], sizes = [1, 90], strides = [1, 1]} : vector<4x90xf32> to vector<1x90xf32>
    %452 = vector.shape_cast %451 : vector<1x90xf32> to vector<90xf32>
    %c3_93 = arith.constant 3 : index
    %453 = memref.load %arg1[%c3_93] : memref<140xf32, #tpu.memory_space<smem>>
    %454 = vector.broadcast %453 : f32 to vector<90xf32>
    %455 = arith.mulf %452, %454 : vector<90xf32>
    %456 = vector.extract_strided_slice %7 {offsets = [1, 0], sizes = [1, 90], strides = [1, 1]} : vector<4x90xf32> to vector<1x90xf32>
    %457 = vector.shape_cast %456 : vector<1x90xf32> to vector<90xf32>
    %c7_94 = arith.constant 7 : index
    %458 = memref.load %arg1[%c7_94] : memref<140xf32, #tpu.memory_space<smem>>
    %459 = vector.broadcast %458 : f32 to vector<90xf32>
    %460 = arith.mulf %457, %459 : vector<90xf32>
    %461 = arith.addf %455, %460 : vector<90xf32>
    %462 = vector.extract_strided_slice %7 {offsets = [2, 0], sizes = [1, 90], strides = [1, 1]} : vector<4x90xf32> to vector<1x90xf32>
    %463 = vector.shape_cast %462 : vector<1x90xf32> to vector<90xf32>
    %c11_95 = arith.constant 11 : index
    %464 = memref.load %arg1[%c11_95] : memref<140xf32, #tpu.memory_space<smem>>
    %465 = vector.broadcast %464 : f32 to vector<90xf32>
    %466 = arith.mulf %463, %465 : vector<90xf32>
    %467 = arith.addf %461, %466 : vector<90xf32>
    %468 = vector.extract_strided_slice %7 {offsets = [3, 0], sizes = [1, 90], strides = [1, 1]} : vector<4x90xf32> to vector<1x90xf32>
    %469 = vector.shape_cast %468 : vector<1x90xf32> to vector<90xf32>
    %c15_96 = arith.constant 15 : index
    %470 = memref.load %arg1[%c15_96] : memref<140xf32, #tpu.memory_space<smem>>
    %471 = vector.broadcast %470 : f32 to vector<90xf32>
    %472 = arith.mulf %469, %471 : vector<90xf32>
    %473 = arith.addf %467, %472 : vector<90xf32>
    %c19_97 = arith.constant 19 : index
    %474 = memref.load %arg1[%c19_97] : memref<140xf32, #tpu.memory_space<smem>>
    %475 = vector.broadcast %474 : f32 to vector<90xf32>
    %476 = arith.addf %473, %475 : vector<90xf32>
    %cst_98 = arith.constant 0.000000e+00 : f32
    %477 = vector.broadcast %cst_98 : f32 to vector<90xf32>
    %478 = arith.maximumf %476, %477 : vector<90xf32>
    %479 = arith.mulf %478, %363 : vector<90xf32>
    %480 = vector.extract_strided_slice %38 {offsets = [0], sizes = [72], strides = [1]} : vector<90xf32> to vector<72xf32>
    %c20 = arith.constant 20 : index
    %481 = memref.load %arg1[%c20] : memref<140xf32, #tpu.memory_space<smem>>
    %482 = vector.broadcast %481 : f32 to vector<72xf32>
    %483 = arith.mulf %480, %482 : vector<72xf32>
    %484 = vector.extract_strided_slice %1 {offsets = [0, 0], sizes = [1, 72], strides = [1, 1]} : vector<4x90xf32> to vector<1x72xf32>
    %485 = vector.shape_cast %484 : vector<1x72xf32> to vector<72xf32>
    %c60 = arith.constant 60 : index
    %486 = memref.load %arg1[%c60] : memref<140xf32, #tpu.memory_space<smem>>
    %487 = vector.broadcast %486 : f32 to vector<72xf32>
    %488 = arith.mulf %485, %487 : vector<72xf32>
    %489 = vector.extract_strided_slice %156 {offsets = [0], sizes = [72], strides = [1]} : vector<90xf32> to vector<72xf32>
    %c24 = arith.constant 24 : index
    %490 = memref.load %arg1[%c24] : memref<140xf32, #tpu.memory_space<smem>>
    %491 = vector.broadcast %490 : f32 to vector<72xf32>
    %492 = arith.mulf %489, %491 : vector<72xf32>
    %493 = vector.extract_strided_slice %3 {offsets = [0, 0], sizes = [1, 72], strides = [1, 1]} : vector<4x90xf32> to vector<1x72xf32>
    %494 = vector.shape_cast %493 : vector<1x72xf32> to vector<72xf32>
    %c64 = arith.constant 64 : index
    %495 = memref.load %arg1[%c64] : memref<140xf32, #tpu.memory_space<smem>>
    %496 = vector.broadcast %495 : f32 to vector<72xf32>
    %497 = arith.mulf %494, %496 : vector<72xf32>
    %498 = arith.addf %483, %492 : vector<72xf32>
    %499 = arith.addf %488, %497 : vector<72xf32>
    %500 = vector.extract_strided_slice %38 {offsets = [1], sizes = [72], strides = [1]} : vector<90xf32> to vector<72xf32>
    %c28 = arith.constant 28 : index
    %501 = memref.load %arg1[%c28] : memref<140xf32, #tpu.memory_space<smem>>
    %502 = vector.broadcast %501 : f32 to vector<72xf32>
    %503 = arith.mulf %500, %502 : vector<72xf32>
    %504 = vector.extract_strided_slice %1 {offsets = [0, 1], sizes = [1, 72], strides = [1, 1]} : vector<4x90xf32> to vector<1x72xf32>
    %505 = vector.shape_cast %504 : vector<1x72xf32> to vector<72xf32>
    %c68 = arith.constant 68 : index
    %506 = memref.load %arg1[%c68] : memref<140xf32, #tpu.memory_space<smem>>
    %507 = vector.broadcast %506 : f32 to vector<72xf32>
    %508 = arith.mulf %505, %507 : vector<72xf32>
    %509 = arith.addf %498, %503 : vector<72xf32>
    %510 = arith.addf %499, %508 : vector<72xf32>
    %511 = vector.extract_strided_slice %274 {offsets = [0], sizes = [72], strides = [1]} : vector<90xf32> to vector<72xf32>
    %c32 = arith.constant 32 : index
    %512 = memref.load %arg1[%c32] : memref<140xf32, #tpu.memory_space<smem>>
    %513 = vector.broadcast %512 : f32 to vector<72xf32>
    %514 = arith.mulf %511, %513 : vector<72xf32>
    %515 = vector.extract_strided_slice %5 {offsets = [0, 0], sizes = [1, 72], strides = [1, 1]} : vector<4x90xf32> to vector<1x72xf32>
    %516 = vector.shape_cast %515 : vector<1x72xf32> to vector<72xf32>
    %c72 = arith.constant 72 : index
    %517 = memref.load %arg1[%c72] : memref<140xf32, #tpu.memory_space<smem>>
    %518 = vector.broadcast %517 : f32 to vector<72xf32>
    %519 = arith.mulf %516, %518 : vector<72xf32>
    %520 = arith.addf %509, %514 : vector<72xf32>
    %521 = arith.addf %510, %519 : vector<72xf32>
    %522 = vector.extract_strided_slice %392 {offsets = [0], sizes = [72], strides = [1]} : vector<90xf32> to vector<72xf32>
    %c36 = arith.constant 36 : index
    %523 = memref.load %arg1[%c36] : memref<140xf32, #tpu.memory_space<smem>>
    %524 = vector.broadcast %523 : f32 to vector<72xf32>
    %525 = arith.mulf %522, %524 : vector<72xf32>
    %526 = vector.extract_strided_slice %7 {offsets = [0, 0], sizes = [1, 72], strides = [1, 1]} : vector<4x90xf32> to vector<1x72xf32>
    %527 = vector.shape_cast %526 : vector<1x72xf32> to vector<72xf32>
    %c76 = arith.constant 76 : index
    %528 = memref.load %arg1[%c76] : memref<140xf32, #tpu.memory_space<smem>>
    %529 = vector.broadcast %528 : f32 to vector<72xf32>
    %530 = arith.mulf %527, %529 : vector<72xf32>
    %531 = arith.addf %520, %525 : vector<72xf32>
    %532 = arith.addf %521, %530 : vector<72xf32>
    %533 = vector.extract_strided_slice %274 {offsets = [1], sizes = [72], strides = [1]} : vector<90xf32> to vector<72xf32>
    %c40 = arith.constant 40 : index
    %534 = memref.load %arg1[%c40] : memref<140xf32, #tpu.memory_space<smem>>
    %535 = vector.broadcast %534 : f32 to vector<72xf32>
    %536 = arith.mulf %533, %535 : vector<72xf32>
    %537 = vector.extract_strided_slice %5 {offsets = [0, 1], sizes = [1, 72], strides = [1, 1]} : vector<4x90xf32> to vector<1x72xf32>
    %538 = vector.shape_cast %537 : vector<1x72xf32> to vector<72xf32>
    %c80 = arith.constant 80 : index
    %539 = memref.load %arg1[%c80] : memref<140xf32, #tpu.memory_space<smem>>
    %540 = vector.broadcast %539 : f32 to vector<72xf32>
    %541 = arith.mulf %538, %540 : vector<72xf32>
    %542 = arith.addf %531, %536 : vector<72xf32>
    %543 = arith.addf %532, %541 : vector<72xf32>
    %544 = vector.extract_strided_slice %38 {offsets = [9], sizes = [72], strides = [1]} : vector<90xf32> to vector<72xf32>
    %c44 = arith.constant 44 : index
    %545 = memref.load %arg1[%c44] : memref<140xf32, #tpu.memory_space<smem>>
    %546 = vector.broadcast %545 : f32 to vector<72xf32>
    %547 = arith.mulf %544, %546 : vector<72xf32>
    %548 = vector.extract_strided_slice %1 {offsets = [0, 9], sizes = [1, 72], strides = [1, 1]} : vector<4x90xf32> to vector<1x72xf32>
    %549 = vector.shape_cast %548 : vector<1x72xf32> to vector<72xf32>
    %c84 = arith.constant 84 : index
    %550 = memref.load %arg1[%c84] : memref<140xf32, #tpu.memory_space<smem>>
    %551 = vector.broadcast %550 : f32 to vector<72xf32>
    %552 = arith.mulf %549, %551 : vector<72xf32>
    %553 = arith.addf %542, %547 : vector<72xf32>
    %554 = arith.addf %543, %552 : vector<72xf32>
    %555 = vector.extract_strided_slice %156 {offsets = [9], sizes = [72], strides = [1]} : vector<90xf32> to vector<72xf32>
    %c48 = arith.constant 48 : index
    %556 = memref.load %arg1[%c48] : memref<140xf32, #tpu.memory_space<smem>>
    %557 = vector.broadcast %556 : f32 to vector<72xf32>
    %558 = arith.mulf %555, %557 : vector<72xf32>
    %559 = vector.extract_strided_slice %3 {offsets = [0, 9], sizes = [1, 72], strides = [1, 1]} : vector<4x90xf32> to vector<1x72xf32>
    %560 = vector.shape_cast %559 : vector<1x72xf32> to vector<72xf32>
    %c88 = arith.constant 88 : index
    %561 = memref.load %arg1[%c88] : memref<140xf32, #tpu.memory_space<smem>>
    %562 = vector.broadcast %561 : f32 to vector<72xf32>
    %563 = arith.mulf %560, %562 : vector<72xf32>
    %564 = arith.addf %553, %558 : vector<72xf32>
    %565 = arith.addf %554, %563 : vector<72xf32>
    %566 = vector.extract_strided_slice %38 {offsets = [10], sizes = [72], strides = [1]} : vector<90xf32> to vector<72xf32>
    %c52 = arith.constant 52 : index
    %567 = memref.load %arg1[%c52] : memref<140xf32, #tpu.memory_space<smem>>
    %568 = vector.broadcast %567 : f32 to vector<72xf32>
    %569 = arith.mulf %566, %568 : vector<72xf32>
    %570 = vector.extract_strided_slice %1 {offsets = [0, 10], sizes = [1, 72], strides = [1, 1]} : vector<4x90xf32> to vector<1x72xf32>
    %571 = vector.shape_cast %570 : vector<1x72xf32> to vector<72xf32>
    %c92 = arith.constant 92 : index
    %572 = memref.load %arg1[%c92] : memref<140xf32, #tpu.memory_space<smem>>
    %573 = vector.broadcast %572 : f32 to vector<72xf32>
    %574 = arith.mulf %571, %573 : vector<72xf32>
    %575 = arith.addf %564, %569 : vector<72xf32>
    %576 = arith.addf %565, %574 : vector<72xf32>
    %c56 = arith.constant 56 : index
    %577 = memref.load %arg1[%c56] : memref<140xf32, #tpu.memory_space<smem>>
    %578 = vector.broadcast %577 : f32 to vector<72xf32>
    %579 = arith.addf %575, %578 : vector<72xf32>
    %c96 = arith.constant 96 : index
    %580 = memref.load %arg1[%c96] : memref<140xf32, #tpu.memory_space<smem>>
    %581 = vector.broadcast %580 : f32 to vector<72xf32>
    %582 = arith.addf %576, %581 : vector<72xf32>
    %583 = vector.extract_strided_slice %67 {offsets = [0], sizes = [72], strides = [1]} : vector<90xf32> to vector<72xf32>
    %c21 = arith.constant 21 : index
    %584 = memref.load %arg1[%c21] : memref<140xf32, #tpu.memory_space<smem>>
    %585 = vector.broadcast %584 : f32 to vector<72xf32>
    %586 = arith.mulf %583, %585 : vector<72xf32>
    %587 = vector.extract_strided_slice %1 {offsets = [1, 0], sizes = [1, 72], strides = [1, 1]} : vector<4x90xf32> to vector<1x72xf32>
    %588 = vector.shape_cast %587 : vector<1x72xf32> to vector<72xf32>
    %c61 = arith.constant 61 : index
    %589 = memref.load %arg1[%c61] : memref<140xf32, #tpu.memory_space<smem>>
    %590 = vector.broadcast %589 : f32 to vector<72xf32>
    %591 = arith.mulf %588, %590 : vector<72xf32>
    %592 = vector.extract_strided_slice %185 {offsets = [0], sizes = [72], strides = [1]} : vector<90xf32> to vector<72xf32>
    %c25 = arith.constant 25 : index
    %593 = memref.load %arg1[%c25] : memref<140xf32, #tpu.memory_space<smem>>
    %594 = vector.broadcast %593 : f32 to vector<72xf32>
    %595 = arith.mulf %592, %594 : vector<72xf32>
    %596 = vector.extract_strided_slice %3 {offsets = [1, 0], sizes = [1, 72], strides = [1, 1]} : vector<4x90xf32> to vector<1x72xf32>
    %597 = vector.shape_cast %596 : vector<1x72xf32> to vector<72xf32>
    %c65 = arith.constant 65 : index
    %598 = memref.load %arg1[%c65] : memref<140xf32, #tpu.memory_space<smem>>
    %599 = vector.broadcast %598 : f32 to vector<72xf32>
    %600 = arith.mulf %597, %599 : vector<72xf32>
    %601 = arith.addf %586, %595 : vector<72xf32>
    %602 = arith.addf %591, %600 : vector<72xf32>
    %603 = vector.extract_strided_slice %67 {offsets = [1], sizes = [72], strides = [1]} : vector<90xf32> to vector<72xf32>
    %c29 = arith.constant 29 : index
    %604 = memref.load %arg1[%c29] : memref<140xf32, #tpu.memory_space<smem>>
    %605 = vector.broadcast %604 : f32 to vector<72xf32>
    %606 = arith.mulf %603, %605 : vector<72xf32>
    %607 = vector.extract_strided_slice %1 {offsets = [1, 1], sizes = [1, 72], strides = [1, 1]} : vector<4x90xf32> to vector<1x72xf32>
    %608 = vector.shape_cast %607 : vector<1x72xf32> to vector<72xf32>
    %c69 = arith.constant 69 : index
    %609 = memref.load %arg1[%c69] : memref<140xf32, #tpu.memory_space<smem>>
    %610 = vector.broadcast %609 : f32 to vector<72xf32>
    %611 = arith.mulf %608, %610 : vector<72xf32>
    %612 = arith.addf %601, %606 : vector<72xf32>
    %613 = arith.addf %602, %611 : vector<72xf32>
    %614 = vector.extract_strided_slice %303 {offsets = [0], sizes = [72], strides = [1]} : vector<90xf32> to vector<72xf32>
    %c33 = arith.constant 33 : index
    %615 = memref.load %arg1[%c33] : memref<140xf32, #tpu.memory_space<smem>>
    %616 = vector.broadcast %615 : f32 to vector<72xf32>
    %617 = arith.mulf %614, %616 : vector<72xf32>
    %618 = vector.extract_strided_slice %5 {offsets = [1, 0], sizes = [1, 72], strides = [1, 1]} : vector<4x90xf32> to vector<1x72xf32>
    %619 = vector.shape_cast %618 : vector<1x72xf32> to vector<72xf32>
    %c73 = arith.constant 73 : index
    %620 = memref.load %arg1[%c73] : memref<140xf32, #tpu.memory_space<smem>>
    %621 = vector.broadcast %620 : f32 to vector<72xf32>
    %622 = arith.mulf %619, %621 : vector<72xf32>
    %623 = arith.addf %612, %617 : vector<72xf32>
    %624 = arith.addf %613, %622 : vector<72xf32>
    %625 = vector.extract_strided_slice %421 {offsets = [0], sizes = [72], strides = [1]} : vector<90xf32> to vector<72xf32>
    %c37 = arith.constant 37 : index
    %626 = memref.load %arg1[%c37] : memref<140xf32, #tpu.memory_space<smem>>
    %627 = vector.broadcast %626 : f32 to vector<72xf32>
    %628 = arith.mulf %625, %627 : vector<72xf32>
    %629 = vector.extract_strided_slice %7 {offsets = [1, 0], sizes = [1, 72], strides = [1, 1]} : vector<4x90xf32> to vector<1x72xf32>
    %630 = vector.shape_cast %629 : vector<1x72xf32> to vector<72xf32>
    %c77 = arith.constant 77 : index
    %631 = memref.load %arg1[%c77] : memref<140xf32, #tpu.memory_space<smem>>
    %632 = vector.broadcast %631 : f32 to vector<72xf32>
    %633 = arith.mulf %630, %632 : vector<72xf32>
    %634 = arith.addf %623, %628 : vector<72xf32>
    %635 = arith.addf %624, %633 : vector<72xf32>
    %636 = vector.extract_strided_slice %303 {offsets = [1], sizes = [72], strides = [1]} : vector<90xf32> to vector<72xf32>
    %c41 = arith.constant 41 : index
    %637 = memref.load %arg1[%c41] : memref<140xf32, #tpu.memory_space<smem>>
    %638 = vector.broadcast %637 : f32 to vector<72xf32>
    %639 = arith.mulf %636, %638 : vector<72xf32>
    %640 = vector.extract_strided_slice %5 {offsets = [1, 1], sizes = [1, 72], strides = [1, 1]} : vector<4x90xf32> to vector<1x72xf32>
    %641 = vector.shape_cast %640 : vector<1x72xf32> to vector<72xf32>
    %c81 = arith.constant 81 : index
    %642 = memref.load %arg1[%c81] : memref<140xf32, #tpu.memory_space<smem>>
    %643 = vector.broadcast %642 : f32 to vector<72xf32>
    %644 = arith.mulf %641, %643 : vector<72xf32>
    %645 = arith.addf %634, %639 : vector<72xf32>
    %646 = arith.addf %635, %644 : vector<72xf32>
    %647 = vector.extract_strided_slice %67 {offsets = [9], sizes = [72], strides = [1]} : vector<90xf32> to vector<72xf32>
    %c45 = arith.constant 45 : index
    %648 = memref.load %arg1[%c45] : memref<140xf32, #tpu.memory_space<smem>>
    %649 = vector.broadcast %648 : f32 to vector<72xf32>
    %650 = arith.mulf %647, %649 : vector<72xf32>
    %651 = vector.extract_strided_slice %1 {offsets = [1, 9], sizes = [1, 72], strides = [1, 1]} : vector<4x90xf32> to vector<1x72xf32>
    %652 = vector.shape_cast %651 : vector<1x72xf32> to vector<72xf32>
    %c85 = arith.constant 85 : index
    %653 = memref.load %arg1[%c85] : memref<140xf32, #tpu.memory_space<smem>>
    %654 = vector.broadcast %653 : f32 to vector<72xf32>
    %655 = arith.mulf %652, %654 : vector<72xf32>
    %656 = arith.addf %645, %650 : vector<72xf32>
    %657 = arith.addf %646, %655 : vector<72xf32>
    %658 = vector.extract_strided_slice %185 {offsets = [9], sizes = [72], strides = [1]} : vector<90xf32> to vector<72xf32>
    %c49 = arith.constant 49 : index
    %659 = memref.load %arg1[%c49] : memref<140xf32, #tpu.memory_space<smem>>
    %660 = vector.broadcast %659 : f32 to vector<72xf32>
    %661 = arith.mulf %658, %660 : vector<72xf32>
    %662 = vector.extract_strided_slice %3 {offsets = [1, 9], sizes = [1, 72], strides = [1, 1]} : vector<4x90xf32> to vector<1x72xf32>
    %663 = vector.shape_cast %662 : vector<1x72xf32> to vector<72xf32>
    %c89 = arith.constant 89 : index
    %664 = memref.load %arg1[%c89] : memref<140xf32, #tpu.memory_space<smem>>
    %665 = vector.broadcast %664 : f32 to vector<72xf32>
    %666 = arith.mulf %663, %665 : vector<72xf32>
    %667 = arith.addf %656, %661 : vector<72xf32>
    %668 = arith.addf %657, %666 : vector<72xf32>
    %669 = vector.extract_strided_slice %67 {offsets = [10], sizes = [72], strides = [1]} : vector<90xf32> to vector<72xf32>
    %c53 = arith.constant 53 : index
    %670 = memref.load %arg1[%c53] : memref<140xf32, #tpu.memory_space<smem>>
    %671 = vector.broadcast %670 : f32 to vector<72xf32>
    %672 = arith.mulf %669, %671 : vector<72xf32>
    %673 = vector.extract_strided_slice %1 {offsets = [1, 10], sizes = [1, 72], strides = [1, 1]} : vector<4x90xf32> to vector<1x72xf32>
    %674 = vector.shape_cast %673 : vector<1x72xf32> to vector<72xf32>
    %c93 = arith.constant 93 : index
    %675 = memref.load %arg1[%c93] : memref<140xf32, #tpu.memory_space<smem>>
    %676 = vector.broadcast %675 : f32 to vector<72xf32>
    %677 = arith.mulf %674, %676 : vector<72xf32>
    %678 = arith.addf %667, %672 : vector<72xf32>
    %679 = arith.addf %668, %677 : vector<72xf32>
    %c57 = arith.constant 57 : index
    %680 = memref.load %arg1[%c57] : memref<140xf32, #tpu.memory_space<smem>>
    %681 = vector.broadcast %680 : f32 to vector<72xf32>
    %682 = arith.addf %678, %681 : vector<72xf32>
    %c97 = arith.constant 97 : index
    %683 = memref.load %arg1[%c97] : memref<140xf32, #tpu.memory_space<smem>>
    %684 = vector.broadcast %683 : f32 to vector<72xf32>
    %685 = arith.addf %679, %684 : vector<72xf32>
    %686 = vector.extract_strided_slice %96 {offsets = [0], sizes = [72], strides = [1]} : vector<90xf32> to vector<72xf32>
    %c22 = arith.constant 22 : index
    %687 = memref.load %arg1[%c22] : memref<140xf32, #tpu.memory_space<smem>>
    %688 = vector.broadcast %687 : f32 to vector<72xf32>
    %689 = arith.mulf %686, %688 : vector<72xf32>
    %690 = vector.extract_strided_slice %1 {offsets = [2, 0], sizes = [1, 72], strides = [1, 1]} : vector<4x90xf32> to vector<1x72xf32>
    %691 = vector.shape_cast %690 : vector<1x72xf32> to vector<72xf32>
    %c62 = arith.constant 62 : index
    %692 = memref.load %arg1[%c62] : memref<140xf32, #tpu.memory_space<smem>>
    %693 = vector.broadcast %692 : f32 to vector<72xf32>
    %694 = arith.mulf %691, %693 : vector<72xf32>
    %695 = vector.extract_strided_slice %214 {offsets = [0], sizes = [72], strides = [1]} : vector<90xf32> to vector<72xf32>
    %c26 = arith.constant 26 : index
    %696 = memref.load %arg1[%c26] : memref<140xf32, #tpu.memory_space<smem>>
    %697 = vector.broadcast %696 : f32 to vector<72xf32>
    %698 = arith.mulf %695, %697 : vector<72xf32>
    %699 = vector.extract_strided_slice %3 {offsets = [2, 0], sizes = [1, 72], strides = [1, 1]} : vector<4x90xf32> to vector<1x72xf32>
    %700 = vector.shape_cast %699 : vector<1x72xf32> to vector<72xf32>
    %c66 = arith.constant 66 : index
    %701 = memref.load %arg1[%c66] : memref<140xf32, #tpu.memory_space<smem>>
    %702 = vector.broadcast %701 : f32 to vector<72xf32>
    %703 = arith.mulf %700, %702 : vector<72xf32>
    %704 = arith.addf %689, %698 : vector<72xf32>
    %705 = arith.addf %694, %703 : vector<72xf32>
    %706 = vector.extract_strided_slice %96 {offsets = [1], sizes = [72], strides = [1]} : vector<90xf32> to vector<72xf32>
    %c30 = arith.constant 30 : index
    %707 = memref.load %arg1[%c30] : memref<140xf32, #tpu.memory_space<smem>>
    %708 = vector.broadcast %707 : f32 to vector<72xf32>
    %709 = arith.mulf %706, %708 : vector<72xf32>
    %710 = vector.extract_strided_slice %1 {offsets = [2, 1], sizes = [1, 72], strides = [1, 1]} : vector<4x90xf32> to vector<1x72xf32>
    %711 = vector.shape_cast %710 : vector<1x72xf32> to vector<72xf32>
    %c70 = arith.constant 70 : index
    %712 = memref.load %arg1[%c70] : memref<140xf32, #tpu.memory_space<smem>>
    %713 = vector.broadcast %712 : f32 to vector<72xf32>
    %714 = arith.mulf %711, %713 : vector<72xf32>
    %715 = arith.addf %704, %709 : vector<72xf32>
    %716 = arith.addf %705, %714 : vector<72xf32>
    %717 = vector.extract_strided_slice %332 {offsets = [0], sizes = [72], strides = [1]} : vector<90xf32> to vector<72xf32>
    %c34 = arith.constant 34 : index
    %718 = memref.load %arg1[%c34] : memref<140xf32, #tpu.memory_space<smem>>
    %719 = vector.broadcast %718 : f32 to vector<72xf32>
    %720 = arith.mulf %717, %719 : vector<72xf32>
    %721 = vector.extract_strided_slice %5 {offsets = [2, 0], sizes = [1, 72], strides = [1, 1]} : vector<4x90xf32> to vector<1x72xf32>
    %722 = vector.shape_cast %721 : vector<1x72xf32> to vector<72xf32>
    %c74 = arith.constant 74 : index
    %723 = memref.load %arg1[%c74] : memref<140xf32, #tpu.memory_space<smem>>
    %724 = vector.broadcast %723 : f32 to vector<72xf32>
    %725 = arith.mulf %722, %724 : vector<72xf32>
    %726 = arith.addf %715, %720 : vector<72xf32>
    %727 = arith.addf %716, %725 : vector<72xf32>
    %728 = vector.extract_strided_slice %450 {offsets = [0], sizes = [72], strides = [1]} : vector<90xf32> to vector<72xf32>
    %c38 = arith.constant 38 : index
    %729 = memref.load %arg1[%c38] : memref<140xf32, #tpu.memory_space<smem>>
    %730 = vector.broadcast %729 : f32 to vector<72xf32>
    %731 = arith.mulf %728, %730 : vector<72xf32>
    %732 = vector.extract_strided_slice %7 {offsets = [2, 0], sizes = [1, 72], strides = [1, 1]} : vector<4x90xf32> to vector<1x72xf32>
    %733 = vector.shape_cast %732 : vector<1x72xf32> to vector<72xf32>
    %c78 = arith.constant 78 : index
    %734 = memref.load %arg1[%c78] : memref<140xf32, #tpu.memory_space<smem>>
    %735 = vector.broadcast %734 : f32 to vector<72xf32>
    %736 = arith.mulf %733, %735 : vector<72xf32>
    %737 = arith.addf %726, %731 : vector<72xf32>
    %738 = arith.addf %727, %736 : vector<72xf32>
    %739 = vector.extract_strided_slice %332 {offsets = [1], sizes = [72], strides = [1]} : vector<90xf32> to vector<72xf32>
    %c42 = arith.constant 42 : index
    %740 = memref.load %arg1[%c42] : memref<140xf32, #tpu.memory_space<smem>>
    %741 = vector.broadcast %740 : f32 to vector<72xf32>
    %742 = arith.mulf %739, %741 : vector<72xf32>
    %743 = vector.extract_strided_slice %5 {offsets = [2, 1], sizes = [1, 72], strides = [1, 1]} : vector<4x90xf32> to vector<1x72xf32>
    %744 = vector.shape_cast %743 : vector<1x72xf32> to vector<72xf32>
    %c82 = arith.constant 82 : index
    %745 = memref.load %arg1[%c82] : memref<140xf32, #tpu.memory_space<smem>>
    %746 = vector.broadcast %745 : f32 to vector<72xf32>
    %747 = arith.mulf %744, %746 : vector<72xf32>
    %748 = arith.addf %737, %742 : vector<72xf32>
    %749 = arith.addf %738, %747 : vector<72xf32>
    %750 = vector.extract_strided_slice %96 {offsets = [9], sizes = [72], strides = [1]} : vector<90xf32> to vector<72xf32>
    %c46 = arith.constant 46 : index
    %751 = memref.load %arg1[%c46] : memref<140xf32, #tpu.memory_space<smem>>
    %752 = vector.broadcast %751 : f32 to vector<72xf32>
    %753 = arith.mulf %750, %752 : vector<72xf32>
    %754 = vector.extract_strided_slice %1 {offsets = [2, 9], sizes = [1, 72], strides = [1, 1]} : vector<4x90xf32> to vector<1x72xf32>
    %755 = vector.shape_cast %754 : vector<1x72xf32> to vector<72xf32>
    %c86 = arith.constant 86 : index
    %756 = memref.load %arg1[%c86] : memref<140xf32, #tpu.memory_space<smem>>
    %757 = vector.broadcast %756 : f32 to vector<72xf32>
    %758 = arith.mulf %755, %757 : vector<72xf32>
    %759 = arith.addf %748, %753 : vector<72xf32>
    %760 = arith.addf %749, %758 : vector<72xf32>
    %761 = vector.extract_strided_slice %214 {offsets = [9], sizes = [72], strides = [1]} : vector<90xf32> to vector<72xf32>
    %c50 = arith.constant 50 : index
    %762 = memref.load %arg1[%c50] : memref<140xf32, #tpu.memory_space<smem>>
    %763 = vector.broadcast %762 : f32 to vector<72xf32>
    %764 = arith.mulf %761, %763 : vector<72xf32>
    %765 = vector.extract_strided_slice %3 {offsets = [2, 9], sizes = [1, 72], strides = [1, 1]} : vector<4x90xf32> to vector<1x72xf32>
    %766 = vector.shape_cast %765 : vector<1x72xf32> to vector<72xf32>
    %c90 = arith.constant 90 : index
    %767 = memref.load %arg1[%c90] : memref<140xf32, #tpu.memory_space<smem>>
    %768 = vector.broadcast %767 : f32 to vector<72xf32>
    %769 = arith.mulf %766, %768 : vector<72xf32>
    %770 = arith.addf %759, %764 : vector<72xf32>
    %771 = arith.addf %760, %769 : vector<72xf32>
    %772 = vector.extract_strided_slice %96 {offsets = [10], sizes = [72], strides = [1]} : vector<90xf32> to vector<72xf32>
    %c54 = arith.constant 54 : index
    %773 = memref.load %arg1[%c54] : memref<140xf32, #tpu.memory_space<smem>>
    %774 = vector.broadcast %773 : f32 to vector<72xf32>
    %775 = arith.mulf %772, %774 : vector<72xf32>
    %776 = vector.extract_strided_slice %1 {offsets = [2, 10], sizes = [1, 72], strides = [1, 1]} : vector<4x90xf32> to vector<1x72xf32>
    %777 = vector.shape_cast %776 : vector<1x72xf32> to vector<72xf32>
    %c94 = arith.constant 94 : index
    %778 = memref.load %arg1[%c94] : memref<140xf32, #tpu.memory_space<smem>>
    %779 = vector.broadcast %778 : f32 to vector<72xf32>
    %780 = arith.mulf %777, %779 : vector<72xf32>
    %781 = arith.addf %770, %775 : vector<72xf32>
    %782 = arith.addf %771, %780 : vector<72xf32>
    %c58 = arith.constant 58 : index
    %783 = memref.load %arg1[%c58] : memref<140xf32, #tpu.memory_space<smem>>
    %784 = vector.broadcast %783 : f32 to vector<72xf32>
    %785 = arith.addf %781, %784 : vector<72xf32>
    %c98 = arith.constant 98 : index
    %786 = memref.load %arg1[%c98] : memref<140xf32, #tpu.memory_space<smem>>
    %787 = vector.broadcast %786 : f32 to vector<72xf32>
    %788 = arith.addf %782, %787 : vector<72xf32>
    %789 = vector.extract_strided_slice %125 {offsets = [0], sizes = [72], strides = [1]} : vector<90xf32> to vector<72xf32>
    %c23 = arith.constant 23 : index
    %790 = memref.load %arg1[%c23] : memref<140xf32, #tpu.memory_space<smem>>
    %791 = vector.broadcast %790 : f32 to vector<72xf32>
    %792 = arith.mulf %789, %791 : vector<72xf32>
    %793 = vector.extract_strided_slice %1 {offsets = [3, 0], sizes = [1, 72], strides = [1, 1]} : vector<4x90xf32> to vector<1x72xf32>
    %794 = vector.shape_cast %793 : vector<1x72xf32> to vector<72xf32>
    %c63 = arith.constant 63 : index
    %795 = memref.load %arg1[%c63] : memref<140xf32, #tpu.memory_space<smem>>
    %796 = vector.broadcast %795 : f32 to vector<72xf32>
    %797 = arith.mulf %794, %796 : vector<72xf32>
    %798 = vector.extract_strided_slice %243 {offsets = [0], sizes = [72], strides = [1]} : vector<90xf32> to vector<72xf32>
    %c27 = arith.constant 27 : index
    %799 = memref.load %arg1[%c27] : memref<140xf32, #tpu.memory_space<smem>>
    %800 = vector.broadcast %799 : f32 to vector<72xf32>
    %801 = arith.mulf %798, %800 : vector<72xf32>
    %802 = vector.extract_strided_slice %3 {offsets = [3, 0], sizes = [1, 72], strides = [1, 1]} : vector<4x90xf32> to vector<1x72xf32>
    %803 = vector.shape_cast %802 : vector<1x72xf32> to vector<72xf32>
    %c67 = arith.constant 67 : index
    %804 = memref.load %arg1[%c67] : memref<140xf32, #tpu.memory_space<smem>>
    %805 = vector.broadcast %804 : f32 to vector<72xf32>
    %806 = arith.mulf %803, %805 : vector<72xf32>
    %807 = arith.addf %792, %801 : vector<72xf32>
    %808 = arith.addf %797, %806 : vector<72xf32>
    %809 = vector.extract_strided_slice %125 {offsets = [1], sizes = [72], strides = [1]} : vector<90xf32> to vector<72xf32>
    %c31 = arith.constant 31 : index
    %810 = memref.load %arg1[%c31] : memref<140xf32, #tpu.memory_space<smem>>
    %811 = vector.broadcast %810 : f32 to vector<72xf32>
    %812 = arith.mulf %809, %811 : vector<72xf32>
    %813 = vector.extract_strided_slice %1 {offsets = [3, 1], sizes = [1, 72], strides = [1, 1]} : vector<4x90xf32> to vector<1x72xf32>
    %814 = vector.shape_cast %813 : vector<1x72xf32> to vector<72xf32>
    %c71 = arith.constant 71 : index
    %815 = memref.load %arg1[%c71] : memref<140xf32, #tpu.memory_space<smem>>
    %816 = vector.broadcast %815 : f32 to vector<72xf32>
    %817 = arith.mulf %814, %816 : vector<72xf32>
    %818 = arith.addf %807, %812 : vector<72xf32>
    %819 = arith.addf %808, %817 : vector<72xf32>
    %820 = vector.extract_strided_slice %361 {offsets = [0], sizes = [72], strides = [1]} : vector<90xf32> to vector<72xf32>
    %c35 = arith.constant 35 : index
    %821 = memref.load %arg1[%c35] : memref<140xf32, #tpu.memory_space<smem>>
    %822 = vector.broadcast %821 : f32 to vector<72xf32>
    %823 = arith.mulf %820, %822 : vector<72xf32>
    %824 = vector.extract_strided_slice %5 {offsets = [3, 0], sizes = [1, 72], strides = [1, 1]} : vector<4x90xf32> to vector<1x72xf32>
    %825 = vector.shape_cast %824 : vector<1x72xf32> to vector<72xf32>
    %c75 = arith.constant 75 : index
    %826 = memref.load %arg1[%c75] : memref<140xf32, #tpu.memory_space<smem>>
    %827 = vector.broadcast %826 : f32 to vector<72xf32>
    %828 = arith.mulf %825, %827 : vector<72xf32>
    %829 = arith.addf %818, %823 : vector<72xf32>
    %830 = arith.addf %819, %828 : vector<72xf32>
    %831 = vector.extract_strided_slice %479 {offsets = [0], sizes = [72], strides = [1]} : vector<90xf32> to vector<72xf32>
    %c39 = arith.constant 39 : index
    %832 = memref.load %arg1[%c39] : memref<140xf32, #tpu.memory_space<smem>>
    %833 = vector.broadcast %832 : f32 to vector<72xf32>
    %834 = arith.mulf %831, %833 : vector<72xf32>
    %835 = vector.extract_strided_slice %7 {offsets = [3, 0], sizes = [1, 72], strides = [1, 1]} : vector<4x90xf32> to vector<1x72xf32>
    %836 = vector.shape_cast %835 : vector<1x72xf32> to vector<72xf32>
    %c79 = arith.constant 79 : index
    %837 = memref.load %arg1[%c79] : memref<140xf32, #tpu.memory_space<smem>>
    %838 = vector.broadcast %837 : f32 to vector<72xf32>
    %839 = arith.mulf %836, %838 : vector<72xf32>
    %840 = arith.addf %829, %834 : vector<72xf32>
    %841 = arith.addf %830, %839 : vector<72xf32>
    %842 = vector.extract_strided_slice %361 {offsets = [1], sizes = [72], strides = [1]} : vector<90xf32> to vector<72xf32>
    %c43 = arith.constant 43 : index
    %843 = memref.load %arg1[%c43] : memref<140xf32, #tpu.memory_space<smem>>
    %844 = vector.broadcast %843 : f32 to vector<72xf32>
    %845 = arith.mulf %842, %844 : vector<72xf32>
    %846 = vector.extract_strided_slice %5 {offsets = [3, 1], sizes = [1, 72], strides = [1, 1]} : vector<4x90xf32> to vector<1x72xf32>
    %847 = vector.shape_cast %846 : vector<1x72xf32> to vector<72xf32>
    %c83 = arith.constant 83 : index
    %848 = memref.load %arg1[%c83] : memref<140xf32, #tpu.memory_space<smem>>
    %849 = vector.broadcast %848 : f32 to vector<72xf32>
    %850 = arith.mulf %847, %849 : vector<72xf32>
    %851 = arith.addf %840, %845 : vector<72xf32>
    %852 = arith.addf %841, %850 : vector<72xf32>
    %853 = vector.extract_strided_slice %125 {offsets = [9], sizes = [72], strides = [1]} : vector<90xf32> to vector<72xf32>
    %c47 = arith.constant 47 : index
    %854 = memref.load %arg1[%c47] : memref<140xf32, #tpu.memory_space<smem>>
    %855 = vector.broadcast %854 : f32 to vector<72xf32>
    %856 = arith.mulf %853, %855 : vector<72xf32>
    %857 = vector.extract_strided_slice %1 {offsets = [3, 9], sizes = [1, 72], strides = [1, 1]} : vector<4x90xf32> to vector<1x72xf32>
    %858 = vector.shape_cast %857 : vector<1x72xf32> to vector<72xf32>
    %c87 = arith.constant 87 : index
    %859 = memref.load %arg1[%c87] : memref<140xf32, #tpu.memory_space<smem>>
    %860 = vector.broadcast %859 : f32 to vector<72xf32>
    %861 = arith.mulf %858, %860 : vector<72xf32>
    %862 = arith.addf %851, %856 : vector<72xf32>
    %863 = arith.addf %852, %861 : vector<72xf32>
    %864 = vector.extract_strided_slice %243 {offsets = [9], sizes = [72], strides = [1]} : vector<90xf32> to vector<72xf32>
    %c51 = arith.constant 51 : index
    %865 = memref.load %arg1[%c51] : memref<140xf32, #tpu.memory_space<smem>>
    %866 = vector.broadcast %865 : f32 to vector<72xf32>
    %867 = arith.mulf %864, %866 : vector<72xf32>
    %868 = vector.extract_strided_slice %3 {offsets = [3, 9], sizes = [1, 72], strides = [1, 1]} : vector<4x90xf32> to vector<1x72xf32>
    %869 = vector.shape_cast %868 : vector<1x72xf32> to vector<72xf32>
    %c91 = arith.constant 91 : index
    %870 = memref.load %arg1[%c91] : memref<140xf32, #tpu.memory_space<smem>>
    %871 = vector.broadcast %870 : f32 to vector<72xf32>
    %872 = arith.mulf %869, %871 : vector<72xf32>
    %873 = arith.addf %862, %867 : vector<72xf32>
    %874 = arith.addf %863, %872 : vector<72xf32>
    %875 = vector.extract_strided_slice %125 {offsets = [10], sizes = [72], strides = [1]} : vector<90xf32> to vector<72xf32>
    %c55 = arith.constant 55 : index
    %876 = memref.load %arg1[%c55] : memref<140xf32, #tpu.memory_space<smem>>
    %877 = vector.broadcast %876 : f32 to vector<72xf32>
    %878 = arith.mulf %875, %877 : vector<72xf32>
    %879 = vector.extract_strided_slice %1 {offsets = [3, 10], sizes = [1, 72], strides = [1, 1]} : vector<4x90xf32> to vector<1x72xf32>
    %880 = vector.shape_cast %879 : vector<1x72xf32> to vector<72xf32>
    %c95 = arith.constant 95 : index
    %881 = memref.load %arg1[%c95] : memref<140xf32, #tpu.memory_space<smem>>
    %882 = vector.broadcast %881 : f32 to vector<72xf32>
    %883 = arith.mulf %880, %882 : vector<72xf32>
    %884 = arith.addf %873, %878 : vector<72xf32>
    %885 = arith.addf %874, %883 : vector<72xf32>
    %c59 = arith.constant 59 : index
    %886 = memref.load %arg1[%c59] : memref<140xf32, #tpu.memory_space<smem>>
    %887 = vector.broadcast %886 : f32 to vector<72xf32>
    %888 = arith.addf %884, %887 : vector<72xf32>
    %c99 = arith.constant 99 : index
    %889 = memref.load %arg1[%c99] : memref<140xf32, #tpu.memory_space<smem>>
    %890 = vector.broadcast %889 : f32 to vector<72xf32>
    %891 = arith.addf %885, %890 : vector<72xf32>
    %c100 = arith.constant 100 : index
    %892 = memref.load %arg1[%c100] : memref<140xf32, #tpu.memory_space<smem>>
    %893 = vector.broadcast %892 : f32 to vector<72xf32>
    %894 = arith.mulf %579, %893 : vector<72xf32>
    %c120 = arith.constant 120 : index
    %895 = memref.load %arg1[%c120] : memref<140xf32, #tpu.memory_space<smem>>
    %896 = vector.broadcast %895 : f32 to vector<72xf32>
    %897 = arith.mulf %582, %896 : vector<72xf32>
    %c104 = arith.constant 104 : index
    %898 = memref.load %arg1[%c104] : memref<140xf32, #tpu.memory_space<smem>>
    %899 = vector.broadcast %898 : f32 to vector<72xf32>
    %900 = arith.mulf %682, %899 : vector<72xf32>
    %c124 = arith.constant 124 : index
    %901 = memref.load %arg1[%c124] : memref<140xf32, #tpu.memory_space<smem>>
    %902 = vector.broadcast %901 : f32 to vector<72xf32>
    %903 = arith.mulf %685, %902 : vector<72xf32>
    %904 = arith.addf %894, %900 : vector<72xf32>
    %905 = arith.addf %897, %903 : vector<72xf32>
    %c108 = arith.constant 108 : index
    %906 = memref.load %arg1[%c108] : memref<140xf32, #tpu.memory_space<smem>>
    %907 = vector.broadcast %906 : f32 to vector<72xf32>
    %908 = arith.mulf %785, %907 : vector<72xf32>
    %c128 = arith.constant 128 : index
    %909 = memref.load %arg1[%c128] : memref<140xf32, #tpu.memory_space<smem>>
    %910 = vector.broadcast %909 : f32 to vector<72xf32>
    %911 = arith.mulf %788, %910 : vector<72xf32>
    %912 = arith.addf %904, %908 : vector<72xf32>
    %913 = arith.addf %905, %911 : vector<72xf32>
    %c112 = arith.constant 112 : index
    %914 = memref.load %arg1[%c112] : memref<140xf32, #tpu.memory_space<smem>>
    %915 = vector.broadcast %914 : f32 to vector<72xf32>
    %916 = arith.mulf %888, %915 : vector<72xf32>
    %c132 = arith.constant 132 : index
    %917 = memref.load %arg1[%c132] : memref<140xf32, #tpu.memory_space<smem>>
    %918 = vector.broadcast %917 : f32 to vector<72xf32>
    %919 = arith.mulf %891, %918 : vector<72xf32>
    %920 = arith.addf %912, %916 : vector<72xf32>
    %921 = arith.addf %913, %919 : vector<72xf32>
    %c116 = arith.constant 116 : index
    %922 = memref.load %arg1[%c116] : memref<140xf32, #tpu.memory_space<smem>>
    %923 = vector.broadcast %922 : f32 to vector<72xf32>
    %924 = arith.addf %920, %923 : vector<72xf32>
    %cst_99 = arith.constant 0.000000e+00 : f32
    %925 = vector.broadcast %cst_99 : f32 to vector<72xf32>
    %926 = arith.maximumf %924, %925 : vector<72xf32>
    %c0_100 = arith.constant 0 : index
    %c2_101 = arith.constant 2 : index
    %c0_102 = arith.constant 0 : index
    %927 = vector.load %arg4[%c0_100, %c2_101, %c0_102] : memref<1x8x72xf32, #tpu.memory_space<vmem>>, vector<1x1x72xf32>
    %928 = vector.shape_cast %927 : vector<1x1x72xf32> to vector<72xf32>
    %929 = vector.shape_cast %926 : vector<72xf32> to vector<1x1x72xf32>
    tpu.vector_store %arg4[%c0_100, %c2_101, %c0_102], %929 {strides = array<i32>} : memref<1x8x72xf32, #tpu.memory_space<vmem>>, vector<1x1x72xf32>,
    %c136 = arith.constant 136 : index
    %930 = memref.load %arg1[%c136] : memref<140xf32, #tpu.memory_space<smem>>
    %931 = vector.broadcast %930 : f32 to vector<72xf32>
    %932 = arith.addf %921, %931 : vector<72xf32>
    %cst_103 = arith.constant 0.000000e+00 : f32
    %933 = vector.broadcast %cst_103 : f32 to vector<72xf32>
    %934 = arith.maximumf %932, %933 : vector<72xf32>
    %c0_104 = arith.constant 0 : index
    %c0_105 = arith.constant 0 : index
    %c0_106 = arith.constant 0 : index
    %935 = vector.load %arg4[%c0_104, %c0_105, %c0_106] : memref<1x8x72xf32, #tpu.memory_space<vmem>>, vector<1x1x72xf32>
    %936 = vector.shape_cast %935 : vector<1x1x72xf32> to vector<72xf32>
    %937 = vector.shape_cast %934 : vector<72xf32> to vector<1x1x72xf32>
    tpu.vector_store %arg4[%c0_104, %c0_105, %c0_106], %937 {strides = array<i32>} : memref<1x8x72xf32, #tpu.memory_space<vmem>>, vector<1x1x72xf32>,
    %c101 = arith.constant 101 : index
    %938 = memref.load %arg1[%c101] : memref<140xf32, #tpu.memory_space<smem>>
    %939 = vector.broadcast %938 : f32 to vector<72xf32>
    %940 = arith.mulf %579, %939 : vector<72xf32>
    %c121 = arith.constant 121 : index
    %941 = memref.load %arg1[%c121] : memref<140xf32, #tpu.memory_space<smem>>
    %942 = vector.broadcast %941 : f32 to vector<72xf32>
    %943 = arith.mulf %582, %942 : vector<72xf32>
    %c105 = arith.constant 105 : index
    %944 = memref.load %arg1[%c105] : memref<140xf32, #tpu.memory_space<smem>>
    %945 = vector.broadcast %944 : f32 to vector<72xf32>
    %946 = arith.mulf %682, %945 : vector<72xf32>
    %c125 = arith.constant 125 : index
    %947 = memref.load %arg1[%c125] : memref<140xf32, #tpu.memory_space<smem>>
    %948 = vector.broadcast %947 : f32 to vector<72xf32>
    %949 = arith.mulf %685, %948 : vector<72xf32>
    %950 = arith.addf %940, %946 : vector<72xf32>
    %951 = arith.addf %943, %949 : vector<72xf32>
    %c109 = arith.constant 109 : index
    %952 = memref.load %arg1[%c109] : memref<140xf32, #tpu.memory_space<smem>>
    %953 = vector.broadcast %952 : f32 to vector<72xf32>
    %954 = arith.mulf %785, %953 : vector<72xf32>
    %c129 = arith.constant 129 : index
    %955 = memref.load %arg1[%c129] : memref<140xf32, #tpu.memory_space<smem>>
    %956 = vector.broadcast %955 : f32 to vector<72xf32>
    %957 = arith.mulf %788, %956 : vector<72xf32>
    %958 = arith.addf %950, %954 : vector<72xf32>
    %959 = arith.addf %951, %957 : vector<72xf32>
    %c113 = arith.constant 113 : index
    %960 = memref.load %arg1[%c113] : memref<140xf32, #tpu.memory_space<smem>>
    %961 = vector.broadcast %960 : f32 to vector<72xf32>
    %962 = arith.mulf %888, %961 : vector<72xf32>
    %c133 = arith.constant 133 : index
    %963 = memref.load %arg1[%c133] : memref<140xf32, #tpu.memory_space<smem>>
    %964 = vector.broadcast %963 : f32 to vector<72xf32>
    %965 = arith.mulf %891, %964 : vector<72xf32>
    %966 = arith.addf %958, %962 : vector<72xf32>
    %967 = arith.addf %959, %965 : vector<72xf32>
    %c117 = arith.constant 117 : index
    %968 = memref.load %arg1[%c117] : memref<140xf32, #tpu.memory_space<smem>>
    %969 = vector.broadcast %968 : f32 to vector<72xf32>
    %970 = arith.addf %966, %969 : vector<72xf32>
    %cst_107 = arith.constant 0.000000e+00 : f32
    %971 = vector.broadcast %cst_107 : f32 to vector<72xf32>
    %972 = arith.maximumf %970, %971 : vector<72xf32>
    %c0_108 = arith.constant 0 : index
    %c6_109 = arith.constant 6 : index
    %c0_110 = arith.constant 0 : index
    %973 = vector.load %arg4[%c0_108, %c6_109, %c0_110] : memref<1x8x72xf32, #tpu.memory_space<vmem>>, vector<1x1x72xf32>
    %974 = vector.shape_cast %973 : vector<1x1x72xf32> to vector<72xf32>
    %975 = vector.shape_cast %972 : vector<72xf32> to vector<1x1x72xf32>
    tpu.vector_store %arg4[%c0_108, %c6_109, %c0_110], %975 {strides = array<i32>} : memref<1x8x72xf32, #tpu.memory_space<vmem>>, vector<1x1x72xf32>,
    %c137 = arith.constant 137 : index
    %976 = memref.load %arg1[%c137] : memref<140xf32, #tpu.memory_space<smem>>
    %977 = vector.broadcast %976 : f32 to vector<72xf32>
    %978 = arith.addf %967, %977 : vector<72xf32>
    %cst_111 = arith.constant 0.000000e+00 : f32
    %979 = vector.broadcast %cst_111 : f32 to vector<72xf32>
    %980 = arith.maximumf %978, %979 : vector<72xf32>
    %c0_112 = arith.constant 0 : index
    %c4_113 = arith.constant 4 : index
    %c0_114 = arith.constant 0 : index
    %981 = vector.load %arg4[%c0_112, %c4_113, %c0_114] : memref<1x8x72xf32, #tpu.memory_space<vmem>>, vector<1x1x72xf32>
    %982 = vector.shape_cast %981 : vector<1x1x72xf32> to vector<72xf32>
    %983 = vector.shape_cast %980 : vector<72xf32> to vector<1x1x72xf32>
    tpu.vector_store %arg4[%c0_112, %c4_113, %c0_114], %983 {strides = array<i32>} : memref<1x8x72xf32, #tpu.memory_space<vmem>>, vector<1x1x72xf32>,
    %c102 = arith.constant 102 : index
    %984 = memref.load %arg1[%c102] : memref<140xf32, #tpu.memory_space<smem>>
    %985 = vector.broadcast %984 : f32 to vector<72xf32>
    %986 = arith.mulf %579, %985 : vector<72xf32>
    %c122 = arith.constant 122 : index
    %987 = memref.load %arg1[%c122] : memref<140xf32, #tpu.memory_space<smem>>
    %988 = vector.broadcast %987 : f32 to vector<72xf32>
    %989 = arith.mulf %582, %988 : vector<72xf32>
    %c106 = arith.constant 106 : index
    %990 = memref.load %arg1[%c106] : memref<140xf32, #tpu.memory_space<smem>>
    %991 = vector.broadcast %990 : f32 to vector<72xf32>
    %992 = arith.mulf %682, %991 : vector<72xf32>
    %c126 = arith.constant 126 : index
    %993 = memref.load %arg1[%c126] : memref<140xf32, #tpu.memory_space<smem>>
    %994 = vector.broadcast %993 : f32 to vector<72xf32>
    %995 = arith.mulf %685, %994 : vector<72xf32>
    %996 = arith.addf %986, %992 : vector<72xf32>
    %997 = arith.addf %989, %995 : vector<72xf32>
    %c110 = arith.constant 110 : index
    %998 = memref.load %arg1[%c110] : memref<140xf32, #tpu.memory_space<smem>>
    %999 = vector.broadcast %998 : f32 to vector<72xf32>
    %1000 = arith.mulf %785, %999 : vector<72xf32>
    %c130 = arith.constant 130 : index
    %1001 = memref.load %arg1[%c130] : memref<140xf32, #tpu.memory_space<smem>>
    %1002 = vector.broadcast %1001 : f32 to vector<72xf32>
    %1003 = arith.mulf %788, %1002 : vector<72xf32>
    %1004 = arith.addf %996, %1000 : vector<72xf32>
    %1005 = arith.addf %997, %1003 : vector<72xf32>
    %c114 = arith.constant 114 : index
    %1006 = memref.load %arg1[%c114] : memref<140xf32, #tpu.memory_space<smem>>
    %1007 = vector.broadcast %1006 : f32 to vector<72xf32>
    %1008 = arith.mulf %888, %1007 : vector<72xf32>
    %c134 = arith.constant 134 : index
    %1009 = memref.load %arg1[%c134] : memref<140xf32, #tpu.memory_space<smem>>
    %1010 = vector.broadcast %1009 : f32 to vector<72xf32>
    %1011 = arith.mulf %891, %1010 : vector<72xf32>
    %1012 = arith.addf %1004, %1008 : vector<72xf32>
    %1013 = arith.addf %1005, %1011 : vector<72xf32>
    %c118 = arith.constant 118 : index
    %1014 = memref.load %arg1[%c118] : memref<140xf32, #tpu.memory_space<smem>>
    %1015 = vector.broadcast %1014 : f32 to vector<72xf32>
    %1016 = arith.addf %1012, %1015 : vector<72xf32>
    %cst_115 = arith.constant 0.000000e+00 : f32
    %1017 = vector.broadcast %cst_115 : f32 to vector<72xf32>
    %1018 = arith.maximumf %1016, %1017 : vector<72xf32>
    %c0_116 = arith.constant 0 : index
    %c3_117 = arith.constant 3 : index
    %c0_118 = arith.constant 0 : index
    %1019 = vector.load %arg4[%c0_116, %c3_117, %c0_118] : memref<1x8x72xf32, #tpu.memory_space<vmem>>, vector<1x1x72xf32>
    %1020 = vector.shape_cast %1019 : vector<1x1x72xf32> to vector<72xf32>
    %1021 = vector.shape_cast %1018 : vector<72xf32> to vector<1x1x72xf32>
    tpu.vector_store %arg4[%c0_116, %c3_117, %c0_118], %1021 {strides = array<i32>} : memref<1x8x72xf32, #tpu.memory_space<vmem>>, vector<1x1x72xf32>,
    %c138 = arith.constant 138 : index
    %1022 = memref.load %arg1[%c138] : memref<140xf32, #tpu.memory_space<smem>>
    %1023 = vector.broadcast %1022 : f32 to vector<72xf32>
    %1024 = arith.addf %1013, %1023 : vector<72xf32>
    %cst_119 = arith.constant 0.000000e+00 : f32
    %1025 = vector.broadcast %cst_119 : f32 to vector<72xf32>
    %1026 = arith.maximumf %1024, %1025 : vector<72xf32>
    %c0_120 = arith.constant 0 : index
    %c1_121 = arith.constant 1 : index
    %c0_122 = arith.constant 0 : index
    %1027 = vector.load %arg4[%c0_120, %c1_121, %c0_122] : memref<1x8x72xf32, #tpu.memory_space<vmem>>, vector<1x1x72xf32>
    %1028 = vector.shape_cast %1027 : vector<1x1x72xf32> to vector<72xf32>
    %1029 = vector.shape_cast %1026 : vector<72xf32> to vector<1x1x72xf32>
    tpu.vector_store %arg4[%c0_120, %c1_121, %c0_122], %1029 {strides = array<i32>} : memref<1x8x72xf32, #tpu.memory_space<vmem>>, vector<1x1x72xf32>,
    %c103 = arith.constant 103 : index
    %1030 = memref.load %arg1[%c103] : memref<140xf32, #tpu.memory_space<smem>>
    %1031 = vector.broadcast %1030 : f32 to vector<72xf32>
    %1032 = arith.mulf %579, %1031 : vector<72xf32>
    %c123 = arith.constant 123 : index
    %1033 = memref.load %arg1[%c123] : memref<140xf32, #tpu.memory_space<smem>>
    %1034 = vector.broadcast %1033 : f32 to vector<72xf32>
    %1035 = arith.mulf %582, %1034 : vector<72xf32>
    %c107 = arith.constant 107 : index
    %1036 = memref.load %arg1[%c107] : memref<140xf32, #tpu.memory_space<smem>>
    %1037 = vector.broadcast %1036 : f32 to vector<72xf32>
    %1038 = arith.mulf %682, %1037 : vector<72xf32>
    %c127 = arith.constant 127 : index
    %1039 = memref.load %arg1[%c127] : memref<140xf32, #tpu.memory_space<smem>>
    %1040 = vector.broadcast %1039 : f32 to vector<72xf32>
    %1041 = arith.mulf %685, %1040 : vector<72xf32>
    %1042 = arith.addf %1032, %1038 : vector<72xf32>
    %1043 = arith.addf %1035, %1041 : vector<72xf32>
    %c111 = arith.constant 111 : index
    %1044 = memref.load %arg1[%c111] : memref<140xf32, #tpu.memory_space<smem>>
    %1045 = vector.broadcast %1044 : f32 to vector<72xf32>
    %1046 = arith.mulf %785, %1045 : vector<72xf32>
    %c131 = arith.constant 131 : index
    %1047 = memref.load %arg1[%c131] : memref<140xf32, #tpu.memory_space<smem>>
    %1048 = vector.broadcast %1047 : f32 to vector<72xf32>
    %1049 = arith.mulf %788, %1048 : vector<72xf32>
    %1050 = arith.addf %1042, %1046 : vector<72xf32>
    %1051 = arith.addf %1043, %1049 : vector<72xf32>
    %c115 = arith.constant 115 : index
    %1052 = memref.load %arg1[%c115] : memref<140xf32, #tpu.memory_space<smem>>
    %1053 = vector.broadcast %1052 : f32 to vector<72xf32>
    %1054 = arith.mulf %888, %1053 : vector<72xf32>
    %c135 = arith.constant 135 : index
    %1055 = memref.load %arg1[%c135] : memref<140xf32, #tpu.memory_space<smem>>
    %1056 = vector.broadcast %1055 : f32 to vector<72xf32>
    %1057 = arith.mulf %891, %1056 : vector<72xf32>
    %1058 = arith.addf %1050, %1054 : vector<72xf32>
    %1059 = arith.addf %1051, %1057 : vector<72xf32>
    %c119 = arith.constant 119 : index
    %1060 = memref.load %arg1[%c119] : memref<140xf32, #tpu.memory_space<smem>>
    %1061 = vector.broadcast %1060 : f32 to vector<72xf32>
    %1062 = arith.addf %1058, %1061 : vector<72xf32>
    %cst_123 = arith.constant 0.000000e+00 : f32
    %1063 = vector.broadcast %cst_123 : f32 to vector<72xf32>
    %1064 = arith.maximumf %1062, %1063 : vector<72xf32>
    %c0_124 = arith.constant 0 : index
    %c7_125 = arith.constant 7 : index
    %c0_126 = arith.constant 0 : index
    %1065 = vector.load %arg4[%c0_124, %c7_125, %c0_126] : memref<1x8x72xf32, #tpu.memory_space<vmem>>, vector<1x1x72xf32>
    %1066 = vector.shape_cast %1065 : vector<1x1x72xf32> to vector<72xf32>
    %1067 = vector.shape_cast %1064 : vector<72xf32> to vector<1x1x72xf32>
    tpu.vector_store %arg4[%c0_124, %c7_125, %c0_126], %1067 {strides = array<i32>} : memref<1x8x72xf32, #tpu.memory_space<vmem>>, vector<1x1x72xf32>,
    %c139 = arith.constant 139 : index
    %1068 = memref.load %arg1[%c139] : memref<140xf32, #tpu.memory_space<smem>>
    %1069 = vector.broadcast %1068 : f32 to vector<72xf32>
    %1070 = arith.addf %1059, %1069 : vector<72xf32>
    %cst_127 = arith.constant 0.000000e+00 : f32
    %1071 = vector.broadcast %cst_127 : f32 to vector<72xf32>
    %1072 = arith.maximumf %1070, %1071 : vector<72xf32>
    %c0_128 = arith.constant 0 : index
    %c5_129 = arith.constant 5 : index
    %c0_130 = arith.constant 0 : index
    %1073 = vector.load %arg4[%c0_128, %c5_129, %c0_130] : memref<1x8x72xf32, #tpu.memory_space<vmem>>, vector<1x1x72xf32>
    %1074 = vector.shape_cast %1073 : vector<1x1x72xf32> to vector<72xf32>
    %1075 = vector.shape_cast %1072 : vector<72xf32> to vector<1x1x72xf32>
    tpu.vector_store %arg4[%c0_128, %c5_129, %c0_130], %1075 {strides = array<i32>} : memref<1x8x72xf32, #tpu.memory_space<vmem>>, vector<1x1x72xf32>,
    return
  }
  func.func @transform_0(%arg0: i32) -> i32 {
    %c0_i32 = arith.constant 0 : i32
    %c0_i32_0 = arith.constant 0 : i32
    return %c0_i32 : i32
  }
  func.func @transform_1(%arg0: i32) -> (i32, i32) {
    %c0_i32 = arith.constant 0 : i32
    %c0_i32_0 = arith.constant 0 : i32
    %c0_i32_1 = arith.constant 0 : i32
    return %c0_i32, %c0_i32_0 : i32, i32
  }
  func.func @transform_2(%arg0: i32) -> (i32, i32, i32, i32) {
    %c0_i32 = arith.constant 0 : i32
    %c0_i32_0 = arith.constant 0 : i32
    %c0_i32_1 = arith.constant 0 : i32
    %c0_i32_2 = arith.constant 0 : i32
    return %arg0, %c0_i32, %c0_i32_0, %c0_i32_1 : i32, i32, i32, i32
  }
  func.func @transform_3(%arg0: i32) -> (i32, i32, i32) {
    %c0_i32 = arith.constant 0 : i32
    %c0_i32_0 = arith.constant 0 : i32
    %c0_i32_1 = arith.constant 0 : i32
    return %arg0, %c0_i32, %c0_i32_0 : i32, i32, i32
  }
}

</mosaic_0001>

<llo_original>
// kernel: _pallas_forward.1
$region0: #{_pallas_forward.1}
  #allocation0 [shape = 'u32[]', space=smem, size = 0x4, offset = 0x4, fixed_abs, tag = 'smem constant byte address 0x4 - core index']
  #allocation1 [shape = 'u32[144,128]{1,0:T(1,128)}', space=vmem, size = 0x12000, scoped, tag = 'internal scratch']
  %s0 = inlined_call_operand.vmem [shape: f32[140], index: 0, kind: input, shape index: {}]
  %s1 = inlined_call_operand.vmem [shape: f32[4,90], index: 1, kind: input, shape index: {}]
  %s2 = inlined_call_operand.vmem [shape: f32[2,4,4,90], index: 2, kind: input, shape index: {}]
  %s3 = inlined_call_operand.vmem [shape: f32[2,8,72], index: 3, kind: output, shape index: {}]
  %s4 = sld [smem:[#allocation0]]
  $region49: #{_pallas_forward.1} parent=0
    _
  %s6 = ssub.s32 1, %s4
  %s7 = scalar_select 0, %s6, %s4
  $region1: #{_pallas_forward.1} parent=0
    #allocation2 [shape = 'u8[1024]{0}', space=smem, size = 0x400, scoped, tag = 'input window, operand 0, single buffered']
    #allocation3 [shape = 's32[2]{0}', space=sflag, size = 0x8, scoped, tag = 'scoped memory for _pallas_forward.1']
    %8 = vsyncpa [#allocation3], 0
    loop: start=0, step=1, limit=4
    $region2: #{_pallas_forward.1} parent=1 // loop_pre_header
      _
    $region3: #{_pallas_forward.1} parent=1 // loop_header
      %s10 = sphi 0, %s14
      %p11 = scmp.ge.s32.totalorder %s10, 4
      %s18 = sphi 0, %s18
      %s20 = sphi 0, %s18
      %s21 = sphi 0, %s20
      %s35 = sphi 0, %s21
      %s39 = sphi 0, %s39
      %s41 = sphi 0, %s39
      %s42 = sphi 0, %s41
      %s56 = sphi 0, %s42
      %s62 = sphi 0, %s64
      %s65 = sphi 0, %s62
      %s66 = sphi 0, %s65
      %s82 = sphi 0, %s66
      %s88 = sphi 0, %s90
      %s91 = sphi 0, %s88
      %s92 = sphi 0, %s91
      %s108 = sphi 0, %s92
    $region4: #{_pallas_forward.1} parent=1 // loop_header_branch
      %13 = sbr.rel (%p11) target = $region8
    $region5: #{_pallas_forward.1} parent=1 // loop_body
      %s15 = ssub.s32 %s10, 1
      %s16 = ssub.s32 %s10, 2
      %s17 = sadd.s32 %s10, 1
      %s19 = sadd.s32 %s18, 1
      %p22 = scmp.eq.s32.totalorder %s10, 1
      %p23 = scmp.ne.s32.totalorder %s18, %s20
      %p24 = scmp.eq.s32.totalorder %s10, 0
      %p25 = por %p23, %p24
      %p26 = scmp.ne.s32.totalorder %s18, %s20
      %p27 = scmp.eq.s32.totalorder %s15, 1
      %p28 = por %p26, %p27
      %p29 = scmp.ne.s32.totalorder %s20, %s21
      %p30 = scmp.eq.s32.totalorder %s15, 0
      %p31 = por %p29, %p30
      %p32 = scmp.ne.s32.totalorder %s20, %s21
      %p33 = scmp.eq.s32.totalorder %s16, 1
      %p34 = por %p32, %p33
      %p36 = scmp.ne.s32.totalorder %s21, %s35
      %p37 = scmp.eq.s32.totalorder %s16, 0
      %p38 = por %p36, %p37
      %s40 = sadd.s32 %s39, 1
      %p43 = scmp.eq.s32.totalorder %s10, 1
      %p44 = scmp.ne.s32.totalorder %s39, %s41
      %p45 = scmp.eq.s32.totalorder %s10, 0
      %p46 = por %p44, %p45
      %p47 = scmp.ne.s32.totalorder %s39, %s41
      %p48 = scmp.eq.s32.totalorder %s15, 1
      %p49 = por %p47, %p48
      %p50 = scmp.ne.s32.totalorder %s41, %s42
      %p51 = scmp.eq.s32.totalorder %s15, 0
      %p52 = por %p50, %p51
      %p53 = scmp.ne.s32.totalorder %s41, %s42
      %p54 = scmp.eq.s32.totalorder %s16, 1
      %p55 = por %p53, %p54
      %p57 = scmp.ne.s32.totalorder %s42, %s56
      %p58 = scmp.eq.s32.totalorder %s16, 0
      %p59 = por %p57, %p58
      %s60 = ssub.s32 %s10, %s17
      %p61 = scmp.eq.s32.totalorder %s60, 0
      %s63 = sadd.s32 %s62, 1
      %s64 = scalar_select %p61, %s62, %s63
      %p67 = pneg %p61
      %p68 = scmp.eq.s32.totalorder %s10, 1
      %p69 = por %p67, %p68
      %p70 = scmp.ne.s32.totalorder %s62, %s65
      %p71 = scmp.eq.s32.totalorder %s10, 0
      %p72 = por %p70, %p71
      %p73 = scmp.ne.s32.totalorder %s62, %s65
      %p74 = scmp.eq.s32.totalorder %s15, 1
      %p75 = por %p73, %p74
      %p76 = scmp.ne.s32.totalorder %s65, %s66
      %p77 = scmp.eq.s32.totalorder %s15, 0
      %p78 = por %p76, %p77
      %p79 = scmp.ne.s32.totalorder %s65, %s66
      %p80 = scmp.eq.s32.totalorder %s16, 1
      %p81 = por %p79, %p80
      %p83 = scmp.ne.s32.totalorder %s66, %s82
      %p84 = scmp.eq.s32.totalorder %s16, 0
      %p85 = por %p83, %p84
      %s86 = ssub.s32 %s10, %s17
      %p87 = scmp.eq.s32.totalorder %s86, 0
      %s89 = sadd.s32 %s88, 1
      %s90 = scalar_select %p87, %s88, %s89
      %p93 = pneg %p87
      %p94 = scmp.eq.s32.totalorder %s10, 1
      %p95 = por %p93, %p94
      %p96 = scmp.ne.s32.totalorder %s88, %s91
      %p97 = scmp.eq.s32.totalorder %s10, 0
      %p98 = por %p96, %p97
      %p99 = scmp.ne.s32.totalorder %s88, %s91
      %p100 = scmp.eq.s32.totalorder %s15, 1
      %p101 = por %p99, %p100
      %p102 = scmp.ne.s32.totalorder %s91, %s92
      %p103 = scmp.eq.s32.totalorder %s15, 0
      %p104 = por %p102, %p103
      %p105 = scmp.ne.s32.totalorder %s91, %s92
      %p106 = scmp.eq.s32.totalorder %s16, 1
      %p107 = por %p105, %p106
      %p109 = scmp.ne.s32.totalorder %s92, %s108
      %p110 = scmp.eq.s32.totalorder %s16, 0
      %p111 = por %p109, %p110
      %p112 = scmp.le.s32.totalorder 1, %s10
      %p113 = scmp.lt.s32.totalorder %s10, 3
      %p114 = pnand %p112, %p113
      %p115 = pneg %p114
      // Predicated region
      $region9: #{_pallas_forward.1} parent=5 // pred_check
        _
      $region10: #{_pallas_forward.1} parent=5 // pred_check_branch
        %117 = sbr.rel (%p114) target = $region12
      $region11: #{_pallas_forward.1} parent=5 // pred_region
        %s118 = ssub.s32 %s10, 1
        // Predicated region
        $region13: #{_pallas_forward.1} parent=11 // pred_check
          %p119 = pneg %p31
        $region14: #{_pallas_forward.1} parent=11 // pred_check_branch
          %121 = sbr.rel (%p119) target = $region16
        $region15: #{_pallas_forward.1} parent=11 // pred_region
          %s123 = ssub.s32 32, 32
          %124 = vsyncadd [#allocation3], %s123
          %s126 = sshll.u32 %s0, 4
          %s127 = int_to_ptr.vmem [resolvable:$true] %s126
          %129 = dma.vmem_to_smem %s127, 32, [#allocation2], [#allocation3]
        $region16: #{_pallas_forward.1} parent=11 // pred_fallthru
          _
        // Predicated region
        $region17: #{_pallas_forward.1} parent=11 // pred_check
          %p130 = pneg %p52
        $region18: #{_pallas_forward.1} parent=11 // pred_check_branch
          %132 = sbr.rel (%p130) target = $region20
        $region19: #{_pallas_forward.1} parent=11 // pred_region
          _
        $region20: #{_pallas_forward.1} parent=11 // pred_fallthru
          _
      $region12: #{_pallas_forward.1} parent=5 // pred_fallthru
        _
      %p133 = scmp.lt.s32.totalorder %s10, 2
      // Predicated region
      $region21: #{_pallas_forward.1} parent=5 // pred_check
        %p134 = pneg %p133
      $region22: #{_pallas_forward.1} parent=5 // pred_check_branch
        %136 = sbr.rel (%p134) target = $region24
      $region23: #{_pallas_forward.1} parent=5 // pred_region
        // Predicated region
        $region25: #{_pallas_forward.1} parent=23 // pred_check
          %p137 = pneg %p72
        $region26: #{_pallas_forward.1} parent=23 // pred_check_branch
          %139 = sbr.rel (%p137) target = $region28
        $region27: #{_pallas_forward.1} parent=23 // pred_region
          %p140 = scmp.lt.s32.totalorder %s10, 1
          %s141 = scalar_select %p140, %s10, 1
          %s142 = smul.addr %s141, 4
          %s143 = smul.addr %s142, 4
          %s144 = scalar_lea.vmem %s2, %s143
        $region28: #{_pallas_forward.1} parent=23 // pred_fallthru
          _
      $region24: #{_pallas_forward.1} parent=5 // pred_fallthru
        _
      %p145 = scmp.le.s32.totalorder 1, %s10
      %p146 = scmp.lt.s32.totalorder %s10, 3
      %p147 = pnand %p145, %p146
      %p148 = pneg %p147
      // Predicated region
      $region29: #{_pallas_forward.1} parent=5 // pred_check
        _
      $region30: #{_pallas_forward.1} parent=5 // pred_check_branch
        %150 = sbr.rel (%p147) target = $region32
      $region31: #{_pallas_forward.1} parent=5 // pred_region
        %s151 = ssub.s32 %s10, 1
        // Predicated region
        $region33: #{_pallas_forward.1} parent=31 // pred_check
          %p152 = pneg %p31
        $region34: #{_pallas_forward.1} parent=31 // pred_check_branch
          %154 = sbr.rel (%p152) target = $region36
        $region35: #{_pallas_forward.1} parent=31 // pred_region
          %155 = dma.done [#allocation3], 32
        $region36: #{_pallas_forward.1} parent=31 // pred_fallthru
          _
        %156 = sfence
        %p157 = pneg %p31
        %p158 = pneg %p28
        %p159 = pneg %p52
        %p160 = pneg %p49
        %p161 = scmp.lt.s32.totalorder %s15, 1
        %s162 = scalar_select %p161, %s15, 1
        %s163 = smul.addr %s162, 4
        %s164 = smul.addr %s163, 4
        %s165 = scalar_lea.vmem %s2, %s164
        %p166 = pneg %p78
        %p167 = pneg %p75
        %p168 = pneg %p104
        %p169 = pneg %p101
        %p170 = scmp.lt.s32.totalorder %s15, 1
        %s171 = scalar_select %p170, %s15, 1
        %s172 = smul.addr %s171, 8
        %s173 = scalar_lea.vmem %s3, %s172
        %p174 = scmp.lt.s32.totalorder %s15, 1
        %s175 = scalar_select %p174, %s15, 1
        %s176 = smul.addr %s175, 4
        %s177 = smul.addr %s176, 4
        %s178 = scalar_lea.vmem %s2, %s177
        %p179 = scmp.lt.s32.totalorder %s15, 1
        %s180 = scalar_select %p179, %s15, 1
        %s181 = smul.addr %s180, 8
        %s182 = scalar_lea.vmem %s3, %s181
        %v183 = vld [vmem:[%s178] sm:$0xf]
        %s184 = scalar_lea.vmem %s178, 4
        %v185 = vld [vmem:[%s184] sm:$0xf]
        %s186 = scalar_lea.vmem %s178, 8
        %v187 = vld [vmem:[%s186] sm:$0xf]
        %s188 = scalar_lea.vmem %s178, 12
        %v189 = vld [vmem:[%s188] sm:$0xf]
        %v190 = vld [vmem:[%s1] sm:$0x1]
        %s191 = sld [smem:[#allocation2]]
        %v192 = vstv %s191
        %v193 = vmul.f32 %v183, %v192
        %s194 = sld [smem:[#allocation2 + $0x4]]
        %v195 = vstv %s194
        %v196 = vmul.f32 %v183, %v195
        %v198 = vrot.slane %v196, 1
        %v200 = vadd.f32 %v193, %v198
        %s201 = sld [smem:[#allocation2 + $0x8]]
        %v202 = vstv %s201
        %v203 = vmul.f32 %v183, %v202
        %v205 = vrot.slane %v203, 2
        %v207 = vadd.f32 %v200, %v205
        %s208 = sld [smem:[#allocation2 + $0xc]]
        %v209 = vstv %s208
        %v210 = vmul.f32 %v183, %v209
        %v212 = vrot.slane %v210, 3
        %v214 = vadd.f32 %v207, %v212
        %s215 = sld [smem:[#allocation2 + $0x10]]
        %v216 = vstv %s215
        %v217 = vadd.f32 %v214, %v216
        %v218 = vmax.f32 %v217, 0.0
        %v219 = vmul.f32 %v218, %v190
        %s220 = sld [smem:[#allocation2 + $0x1]]
        %v221 = vstv %s220
        %v222 = vmul.f32 %v183, %v221
        %s223 = sld [smem:[#allocation2 + $0x5]]
        %v224 = vstv %s223
        %v225 = vmul.f32 %v183, %v224
        %v227 = vrot.slane %v225, 1
        %v229 = vadd.f32 %v222, %v227
        %s230 = sld [smem:[#allocation2 + $0x9]]
        %v231 = vstv %s230
        %v232 = vmul.f32 %v183, %v231
        %v234 = vrot.slane %v232, 2
        %v236 = vadd.f32 %v229, %v234
        %s237 = sld [smem:[#allocation2 + $0xd]]
        %v238 = vstv %s237
        %v239 = vmul.f32 %v183, %v238
        %v241 = vrot.slane %v239, 3
        %v243 = vadd.f32 %v236, %v241
        %s244 = sld [smem:[#allocation2 + $0x11]]
        %v245 = vstv %s244
        %v246 = vadd.f32 %v243, %v245
        %v247 = vmax.f32 %v246, 0.0
        %v248 = vmul.f32 %v247, %v190
        %s249 = sld [smem:[#allocation2 + $0x2]]
        %v250 = vstv %s249
        %v251 = vmul.f32 %v183, %v250
        %s252 = sld [smem:[#allocation2 + $0x6]]
        %v253 = vstv %s252
        %v254 = vmul.f32 %v183, %v253
        %v256 = vrot.slane %v254, 1
        %v258 = vadd.f32 %v251, %v256
        %s259 = sld [smem:[#allocation2 + $0xa]]
        %v260 = vstv %s259
        %v261 = vmul.f32 %v183, %v260
        %v263 = vrot.slane %v261, 2
        %v265 = vadd.f32 %v258, %v263
        %s266 = sld [smem:[#allocation2 + $0xe]]
        %v267 = vstv %s266
        %v268 = vmul.f32 %v183, %v267
        %v270 = vrot.slane %v268, 3
        %v272 = vadd.f32 %v265, %v270
        %s273 = sld [smem:[#allocation2 + $0x12]]
        %v274 = vstv %s273
        %v275 = vadd.f32 %v272, %v274
        %v276 = vmax.f32 %v275, 0.0
        %v277 = vmul.f32 %v276, %v190
        %s278 = sld [smem:[#allocation2 + $0x3]]
        %v279 = vstv %s278
        %v280 = vmul.f32 %v183, %v279
        %s281 = sld [smem:[#allocation2 + $0x7]]
        %v282 = vstv %s281
        %v283 = vmul.f32 %v183, %v282
        %v285 = vrot.slane %v283, 1
        %v287 = vadd.f32 %v280, %v285
        %s288 = sld [smem:[#allocation2 + $0xb]]
        %v289 = vstv %s288
        %v290 = vmul.f32 %v183, %v289
        %v292 = vrot.slane %v290, 2
        %v294 = vadd.f32 %v287, %v292
        %s295 = sld [smem:[#allocation2 + $0xf]]
        %v296 = vstv %s295
        %v297 = vmul.f32 %v183, %v296
        %v299 = vrot.slane %v297, 3
        %v301 = vadd.f32 %v294, %v299
        %s302 = sld [smem:[#allocation2 + $0x13]]
        %v303 = vstv %s302
        %v304 = vadd.f32 %v301, %v303
        %v305 = vmax.f32 %v304, 0.0
        %v306 = vmul.f32 %v305, %v190
        %v307 = vld [vmem:[%s1 + $0x1] sm:$0x1]
        %v308 = vmul.f32 %v185, %v192
        %v309 = vmul.f32 %v185, %v195
        %v311 = vrot.slane %v309, 1
        %v313 = vadd.f32 %v308, %v311
        %v314 = vmul.f32 %v185, %v202
        %v316 = vrot.slane %v314, 2
        %v318 = vadd.f32 %v313, %v316
        %v319 = vmul.f32 %v185, %v209
        %v321 = vrot.slane %v319, 3
        %v323 = vadd.f32 %v318, %v321
        %v324 = vadd.f32 %v323, %v216
        %v325 = vmax.f32 %v324, 0.0
        %v326 = vmul.f32 %v325, %v307
        %v327 = vmul.f32 %v185, %v221
        %v328 = vmul.f32 %v185, %v224
        %v330 = vrot.slane %v328, 1
        %v332 = vadd.f32 %v327, %v330
        %v333 = vmul.f32 %v185, %v231
        %v335 = vrot.slane %v333, 2
        %v337 = vadd.f32 %v332, %v335
        %v338 = vmul.f32 %v185, %v238
        %v340 = vrot.slane %v338, 3
        %v342 = vadd.f32 %v337, %v340
        %v343 = vadd.f32 %v342, %v245
        %v344 = vmax.f32 %v343, 0.0
        %v345 = vmul.f32 %v344, %v307
        %v346 = vmul.f32 %v185, %v250
        %v347 = vmul.f32 %v185, %v253
        %v349 = vrot.slane %v347, 1
        %v351 = vadd.f32 %v346, %v349
        %v352 = vmul.f32 %v185, %v260
        %v354 = vrot.slane %v352, 2
        %v356 = vadd.f32 %v351, %v354
        %v357 = vmul.f32 %v185, %v267
        %v359 = vrot.slane %v357, 3
        %v361 = vadd.f32 %v356, %v359
        %v362 = vadd.f32 %v361, %v274
        %v363 = vmax.f32 %v362, 0.0
        %v364 = vmul.f32 %v363, %v307
        %v365 = vmul.f32 %v185, %v279
        %v366 = vmul.f32 %v185, %v282
        %v368 = vrot.slane %v366, 1
        %v370 = vadd.f32 %v365, %v368
        %v371 = vmul.f32 %v185, %v289
        %v373 = vrot.slane %v371, 2
        %v375 = vadd.f32 %v370, %v373
        %v376 = vmul.f32 %v185, %v296
        %v378 = vrot.slane %v376, 3
        %v380 = vadd.f32 %v375, %v378
        %v381 = vadd.f32 %v380, %v303
        %v382 = vmax.f32 %v381, 0.0
        %v383 = vmul.f32 %v382, %v307
        %v384 = vld [vmem:[%s1 + $0x2] sm:$0x1]
        %v385 = vmul.f32 %v187, %v192
        %v386 = vmul.f32 %v187, %v195
        %v388 = vrot.slane %v386, 1
        %v390 = vadd.f32 %v385, %v388
        %v391 = vmul.f32 %v187, %v202
        %v393 = vrot.slane %v391, 2
        %v395 = vadd.f32 %v390, %v393
        %v396 = vmul.f32 %v187, %v209
        %v398 = vrot.slane %v396, 3
        %v400 = vadd.f32 %v395, %v398
        %v401 = vadd.f32 %v400, %v216
        %v402 = vmax.f32 %v401, 0.0
        %v403 = vmul.f32 %v402, %v384
        %v404 = vmul.f32 %v187, %v221
        %v405 = vmul.f32 %v187, %v224
        %v407 = vrot.slane %v405, 1
        %v409 = vadd.f32 %v404, %v407
        %v410 = vmul.f32 %v187, %v231
        %v412 = vrot.slane %v410, 2
        %v414 = vadd.f32 %v409, %v412
        %v415 = vmul.f32 %v187, %v238
        %v417 = vrot.slane %v415, 3
        %v419 = vadd.f32 %v414, %v417
        %v420 = vadd.f32 %v419, %v245
        %v421 = vmax.f32 %v420, 0.0
        %v422 = vmul.f32 %v421, %v384
        %v423 = vmul.f32 %v187, %v250
        %v424 = vmul.f32 %v187, %v253
        %v426 = vrot.slane %v424, 1
        %v428 = vadd.f32 %v423, %v426
        %v429 = vmul.f32 %v187, %v260
        %v431 = vrot.slane %v429, 2
        %v433 = vadd.f32 %v428, %v431
        %v434 = vmul.f32 %v187, %v267
        %v436 = vrot.slane %v434, 3
        %v438 = vadd.f32 %v433, %v436
        %v439 = vadd.f32 %v438, %v274
        %v440 = vmax.f32 %v439, 0.0
        %v441 = vmul.f32 %v440, %v384
        %v442 = vmul.f32 %v187, %v279
        %v443 = vmul.f32 %v187, %v282
        %v445 = vrot.slane %v443, 1
        %v447 = vadd.f32 %v442, %v445
        %v448 = vmul.f32 %v187, %v289
        %v450 = vrot.slane %v448, 2
        %v452 = vadd.f32 %v447, %v450
        %v453 = vmul.f32 %v187, %v296
        %v455 = vrot.slane %v453, 3
        %v457 = vadd.f32 %v452, %v455
        %v458 = vadd.f32 %v457, %v303
        %v459 = vmax.f32 %v458, 0.0
        %v460 = vmul.f32 %v459, %v384
        %v461 = vld [vmem:[%s1 + $0x3] sm:$0x1]
        %v462 = vmul.f32 %v189, %v192
        %v463 = vmul.f32 %v189, %v195
        %v465 = vrot.slane %v463, 1
        %v467 = vadd.f32 %v462, %v465
        %v468 = vmul.f32 %v189, %v202
        %v470 = vrot.slane %v468, 2
        %v472 = vadd.f32 %v467, %v470
        %v473 = vmul.f32 %v189, %v209
        %v475 = vrot.slane %v473, 3
        %v477 = vadd.f32 %v472, %v475
        %v478 = vadd.f32 %v477, %v216
        %v479 = vmax.f32 %v478, 0.0
        %v480 = vmul.f32 %v479, %v461
        %v481 = vmul.f32 %v189, %v221
        %v482 = vmul.f32 %v189, %v224
        %v484 = vrot.slane %v482, 1
        %v486 = vadd.f32 %v481, %v484
        %v487 = vmul.f32 %v189, %v231
        %v489 = vrot.slane %v487, 2
        %v491 = vadd.f32 %v486, %v489
        %v492 = vmul.f32 %v189, %v238
        %v494 = vrot.slane %v492, 3
        %v496 = vadd.f32 %v491, %v494
        %v497 = vadd.f32 %v496, %v245
        %v498 = vmax.f32 %v497, 0.0
        %v499 = vmul.f32 %v498, %v461
        %v500 = vmul.f32 %v189, %v250
        %v501 = vmul.f32 %v189, %v253
        %v503 = vrot.slane %v501, 1
        %v505 = vadd.f32 %v500, %v503
        %v506 = vmul.f32 %v189, %v260
        %v508 = vrot.slane %v506, 2
        %v510 = vadd.f32 %v505, %v508
        %v511 = vmul.f32 %v189, %v267
        %v513 = vrot.slane %v511, 3
        %v515 = vadd.f32 %v510, %v513
        %v516 = vadd.f32 %v515, %v274
        %v517 = vmax.f32 %v516, 0.0
        %v518 = vmul.f32 %v517, %v461
        %v519 = vmul.f32 %v189, %v279
        %v520 = vmul.f32 %v189, %v282
        %v522 = vrot.slane %v520, 1
        %v524 = vadd.f32 %v519, %v522
        %v525 = vmul.f32 %v189, %v289
        %v527 = vrot.slane %v525, 2
        %v529 = vadd.f32 %v524, %v527
        %v530 = vmul.f32 %v189, %v296
        %v532 = vrot.slane %v530, 3
        %v534 = vadd.f32 %v529, %v532
        %v535 = vadd.f32 %v534, %v303
        %v536 = vmax.f32 %v535, 0.0
        %v537 = vmul.f32 %v536, %v461
        %s538 = sld [smem:[#allocation2 + $0x14]]
        %v539 = vstv %s538
        %v540 = vmul.f32 %v219, %v539
        %s541 = sld [smem:[#allocation2 + $0x3c]]
        %v542 = vstv %s541
        %v543 = vmul.f32 %v183, %v542
        %s544 = sld [smem:[#allocation2 + $0x18]]
        %v545 = vstv %s544
        %v546 = vmul.f32 %v326, %v545
        %s547 = sld [smem:[#allocation2 + $0x40]]
        %v548 = vstv %s547
        %v549 = vmul.f32 %v185, %v548
        %v550 = vadd.f32 %v540, %v546
        %v551 = vadd.f32 %v543, %v549
        %s552 = sld [smem:[#allocation2 + $0x1c]]
        %v553 = vstv %s552
        %v554 = vmul.f32 %v219, %v553
        %s555 = sld [smem:[#allocation2 + $0x44]]
        %v556 = vstv %s555
        %v557 = vmul.f32 %v183, %v556
        %559 = vrot.lane.b32.xlu0 %v554, 127
        %v560 = vpop.permute.xlu0 %559
        %v562 = vadd.f32 %v550, %v560
        %564 = vrot.lane.b32.xlu0 %v557, 127
        %v565 = vpop.permute.xlu0 %564
        %v567 = vadd.f32 %v551, %v565
        %s568 = sld [smem:[#allocation2 + $0x20]]
        %v569 = vstv %s568
        %v570 = vmul.f32 %v403, %v569
        %s571 = sld [smem:[#allocation2 + $0x48]]
        %v572 = vstv %s571
        %v573 = vmul.f32 %v187, %v572
        %v574 = vadd.f32 %v562, %v570
        %v575 = vadd.f32 %v567, %v573
        %s576 = sld [smem:[#allocation2 + $0x24]]
        %v577 = vstv %s576
        %v578 = vmul.f32 %v480, %v577
        %s579 = sld [smem:[#allocation2 + $0x4c]]
        %v580 = vstv %s579
        %v581 = vmul.f32 %v189, %v580
        %v582 = vadd.f32 %v574, %v578
        %v583 = vadd.f32 %v575, %v581
        %s584 = sld [smem:[#allocation2 + $0x28]]
        %v585 = vstv %s584
        %v586 = vmul.f32 %v403, %v585
        %s587 = sld [smem:[#allocation2 + $0x50]]
        %v588 = vstv %s587
        %v589 = vmul.f32 %v187, %v588
        %591 = vrot.lane.b32.xlu0 %v586, 127
        %v592 = vpop.permute.xlu0 %591
        %v594 = vadd.f32 %v582, %v592
        %596 = vrot.lane.b32.xlu0 %v589, 127
        %v597 = vpop.permute.xlu0 %596
        %v599 = vadd.f32 %v583, %v597
        %s600 = sld [smem:[#allocation2 + $0x2c]]
        %v601 = vstv %s600
        %v602 = vmul.f32 %v219, %v601
        %s603 = sld [smem:[#allocation2 + $0x54]]
        %v604 = vstv %s603
        %v605 = vmul.f32 %v183, %v604
        %607 = vrot.lane.b32.xlu0 %v602, 119
        %v608 = vpop.permute.xlu0 %607
        %v610 = vadd.f32 %v594, %v608
        %612 = vrot.lane.b32.xlu0 %v605, 119
        %v613 = vpop.permute.xlu0 %612
        %v615 = vadd.f32 %v599, %v613
        %s616 = sld [smem:[#allocation2 + $0x30]]
        %v617 = vstv %s616
        %v618 = vmul.f32 %v326, %v617
        %s619 = sld [smem:[#allocation2 + $0x58]]
        %v620 = vstv %s619
        %v621 = vmul.f32 %v185, %v620
        %623 = vrot.lane.b32.xlu0 %v618, 119
        %v624 = vpop.permute.xlu0 %623
        %v626 = vadd.f32 %v610, %v624
        %628 = vrot.lane.b32.xlu0 %v621, 119
        %v629 = vpop.permute.xlu0 %628
        %v631 = vadd.f32 %v615, %v629
        %s632 = sld [smem:[#allocation2 + $0x34]]
        %v633 = vstv %s632
        %v634 = vmul.f32 %v219, %v633
        %s635 = sld [smem:[#allocation2 + $0x5c]]
        %v636 = vstv %s635
        %v637 = vmul.f32 %v183, %v636
        %639 = vrot.lane.b32.xlu0 %v634, 118
        %v640 = vpop.permute.xlu0 %639
        %v642 = vadd.f32 %v626, %v640
        %644 = vrot.lane.b32.xlu0 %v637, 118
        %v645 = vpop.permute.xlu0 %644
        %v647 = vadd.f32 %v631, %v645
        %s648 = sld [smem:[#allocation2 + $0x38]]
        %v649 = vstv %s648
        %v650 = vadd.f32 %v642, %v649
        %s651 = sld [smem:[#allocation2 + $0x60]]
        %v652 = vstv %s651
        %v653 = vadd.f32 %v647, %v652
        %s654 = sld [smem:[#allocation2 + $0x15]]
        %v655 = vstv %s654
        %v656 = vmul.f32 %v248, %v655
        %s657 = sld [smem:[#allocation2 + $0x3d]]
        %v658 = vstv %s657
        %v659 = vmul.f32 %v183, %v658
        %s660 = sld [smem:[#allocation2 + $0x19]]
        %v661 = vstv %s660
        %v662 = vmul.f32 %v345, %v661
        %s663 = sld [smem:[#allocation2 + $0x41]]
        %v664 = vstv %s663
        %v665 = vmul.f32 %v185, %v664
        %v666 = vadd.f32 %v656, %v662
        %v667 = vadd.f32 %v659, %v665
        %s668 = sld [smem:[#allocation2 + $0x1d]]
        %v669 = vstv %s668
        %v670 = vmul.f32 %v248, %v669
        %s671 = sld [smem:[#allocation2 + $0x45]]
        %v672 = vstv %s671
        %v673 = vmul.f32 %v183, %v672
        %675 = vrot.lane.b32.xlu0 %v670, 127
        %v676 = vpop.permute.xlu0 %675
        %v678 = vadd.f32 %v666, %v676
        %680 = vrot.lane.b32.xlu0 %v673, 127
        %v681 = vpop.permute.xlu0 %680
        %v683 = vadd.f32 %v667, %v681
        %s684 = sld [smem:[#allocation2 + $0x21]]
        %v685 = vstv %s684
        %v686 = vmul.f32 %v422, %v685
        %s687 = sld [smem:[#allocation2 + $0x49]]
        %v688 = vstv %s687
        %v689 = vmul.f32 %v187, %v688
        %v690 = vadd.f32 %v678, %v686
        %v691 = vadd.f32 %v683, %v689
        %s692 = sld [smem:[#allocation2 + $0x25]]
        %v693 = vstv %s692
        %v694 = vmul.f32 %v499, %v693
        %s695 = sld [smem:[#allocation2 + $0x4d]]
        %v696 = vstv %s695
        %v697 = vmul.f32 %v189, %v696
        %v698 = vadd.f32 %v690, %v694
        %v699 = vadd.f32 %v691, %v697
        %s700 = sld [smem:[#allocation2 + $0x29]]
        %v701 = vstv %s700
        %v702 = vmul.f32 %v422, %v701
        %s703 = sld [smem:[#allocation2 + $0x51]]
        %v704 = vstv %s703
        %v705 = vmul.f32 %v187, %v704
        %707 = vrot.lane.b32.xlu0 %v702, 127
        %v708 = vpop.permute.xlu0 %707
        %v710 = vadd.f32 %v698, %v708
        %712 = vrot.lane.b32.xlu0 %v705, 127
        %v713 = vpop.permute.xlu0 %712
        %v715 = vadd.f32 %v699, %v713
        %s716 = sld [smem:[#allocation2 + $0x2d]]
        %v717 = vstv %s716
        %v718 = vmul.f32 %v248, %v717
        %s719 = sld [smem:[#allocation2 + $0x55]]
        %v720 = vstv %s719
        %v721 = vmul.f32 %v183, %v720
        %723 = vrot.lane.b32.xlu0 %v718, 119
        %v724 = vpop.permute.xlu0 %723
        %v726 = vadd.f32 %v710, %v724
        %728 = vrot.lane.b32.xlu0 %v721, 119
        %v729 = vpop.permute.xlu0 %728
        %v731 = vadd.f32 %v715, %v729
        %s732 = sld [smem:[#allocation2 + $0x31]]
        %v733 = vstv %s732
        %v734 = vmul.f32 %v345, %v733
        %s735 = sld [smem:[#allocation2 + $0x59]]
        %v736 = vstv %s735
        %v737 = vmul.f32 %v185, %v736
        %739 = vrot.lane.b32.xlu0 %v734, 119
        %v740 = vpop.permute.xlu0 %739
        %v742 = vadd.f32 %v726, %v740
        %744 = vrot.lane.b32.xlu0 %v737, 119
        %v745 = vpop.permute.xlu0 %744
        %v747 = vadd.f32 %v731, %v745
        %s748 = sld [smem:[#allocation2 + $0x35]]
        %v749 = vstv %s748
        %v750 = vmul.f32 %v248, %v749
        %s751 = sld [smem:[#allocation2 + $0x5d]]
        %v752 = vstv %s751
        %v753 = vmul.f32 %v183, %v752
        %755 = vrot.lane.b32.xlu0 %v750, 118
        %v756 = vpop.permute.xlu0 %755
        %v758 = vadd.f32 %v742, %v756
        %760 = vrot.lane.b32.xlu0 %v753, 118
        %v761 = vpop.permute.xlu0 %760
        %v763 = vadd.f32 %v747, %v761
        %s764 = sld [smem:[#allocation2 + $0x39]]
        %v765 = vstv %s764
        %v766 = vadd.f32 %v758, %v765
        %s767 = sld [smem:[#allocation2 + $0x61]]
        %v768 = vstv %s767
        %v769 = vadd.f32 %v763, %v768
        %s770 = sld [smem:[#allocation2 + $0x16]]
        %v771 = vstv %s770
        %v772 = vmul.f32 %v277, %v771
        %s773 = sld [smem:[#allocation2 + $0x3e]]
        %v774 = vstv %s773
        %v775 = vmul.f32 %v183, %v774
        %s776 = sld [smem:[#allocation2 + $0x1a]]
        %v777 = vstv %s776
        %v778 = vmul.f32 %v364, %v777
        %s779 = sld [smem:[#allocation2 + $0x42]]
        %v780 = vstv %s779
        %v781 = vmul.f32 %v185, %v780
        %v782 = vadd.f32 %v772, %v778
        %v783 = vadd.f32 %v775, %v781
        %s784 = sld [smem:[#allocation2 + $0x1e]]
        %v785 = vstv %s784
        %v786 = vmul.f32 %v277, %v785
        %s787 = sld [smem:[#allocation2 + $0x46]]
        %v788 = vstv %s787
        %v789 = vmul.f32 %v183, %v788
        %791 = vrot.lane.b32.xlu0 %v786, 127
        %v792 = vpop.permute.xlu0 %791
        %v794 = vadd.f32 %v782, %v792
        %796 = vrot.lane.b32.xlu0 %v789, 127
        %v797 = vpop.permute.xlu0 %796
        %v799 = vadd.f32 %v783, %v797
        %s800 = sld [smem:[#allocation2 + $0x22]]
        %v801 = vstv %s800
        %v802 = vmul.f32 %v441, %v801
        %s803 = sld [smem:[#allocation2 + $0x4a]]
        %v804 = vstv %s803
        %v805 = vmul.f32 %v187, %v804
        %v806 = vadd.f32 %v794, %v802
        %v807 = vadd.f32 %v799, %v805
        %s808 = sld [smem:[#allocation2 + $0x26]]
        %v809 = vstv %s808
        %v810 = vmul.f32 %v518, %v809
        %s811 = sld [smem:[#allocation2 + $0x4e]]
        %v812 = vstv %s811
        %v813 = vmul.f32 %v189, %v812
        %v814 = vadd.f32 %v806, %v810
        %v815 = vadd.f32 %v807, %v813
        %s816 = sld [smem:[#allocation2 + $0x2a]]
        %v817 = vstv %s816
        %v818 = vmul.f32 %v441, %v817
        %s819 = sld [smem:[#allocation2 + $0x52]]
        %v820 = vstv %s819
        %v821 = vmul.f32 %v187, %v820
        %823 = vrot.lane.b32.xlu0 %v818, 127
        %v824 = vpop.permute.xlu0 %823
        %v826 = vadd.f32 %v814, %v824
        %828 = vrot.lane.b32.xlu0 %v821, 127
        %v829 = vpop.permute.xlu0 %828
        %v831 = vadd.f32 %v815, %v829
        %s832 = sld [smem:[#allocation2 + $0x2e]]
        %v833 = vstv %s832
        %v834 = vmul.f32 %v277, %v833
        %s835 = sld [smem:[#allocation2 + $0x56]]
        %v836 = vstv %s835
        %v837 = vmul.f32 %v183, %v836
        %839 = vrot.lane.b32.xlu0 %v834, 119
        %v840 = vpop.permute.xlu0 %839
        %v842 = vadd.f32 %v826, %v840
        %844 = vrot.lane.b32.xlu0 %v837, 119
        %v845 = vpop.permute.xlu0 %844
        %v847 = vadd.f32 %v831, %v845
        %s848 = sld [smem:[#allocation2 + $0x32]]
        %v849 = vstv %s848
        %v850 = vmul.f32 %v364, %v849
        %s851 = sld [smem:[#allocation2 + $0x5a]]
        %v852 = vstv %s851
        %v853 = vmul.f32 %v185, %v852
        %855 = vrot.lane.b32.xlu0 %v850, 119
        %v856 = vpop.permute.xlu0 %855
        %v858 = vadd.f32 %v842, %v856
        %860 = vrot.lane.b32.xlu0 %v853, 119
        %v861 = vpop.permute.xlu0 %860
        %v863 = vadd.f32 %v847, %v861
        %s864 = sld [smem:[#allocation2 + $0x36]]
        %v865 = vstv %s864
        %v866 = vmul.f32 %v277, %v865
        %s867 = sld [smem:[#allocation2 + $0x5e]]
        %v868 = vstv %s867
        %v869 = vmul.f32 %v183, %v868
        %871 = vrot.lane.b32.xlu0 %v866, 118
        %v872 = vpop.permute.xlu0 %871
        %v874 = vadd.f32 %v858, %v872
        %876 = vrot.lane.b32.xlu0 %v869, 118
        %v877 = vpop.permute.xlu0 %876
        %v879 = vadd.f32 %v863, %v877
        %s880 = sld [smem:[#allocation2 + $0x3a]]
        %v881 = vstv %s880
        %v882 = vadd.f32 %v874, %v881
        %s883 = sld [smem:[#allocation2 + $0x62]]
        %v884 = vstv %s883
        %v885 = vadd.f32 %v879, %v884
        %s886 = sld [smem:[#allocation2 + $0x17]]
        %v887 = vstv %s886
        %v888 = vmul.f32 %v306, %v887
        %s889 = sld [smem:[#allocation2 + $0x3f]]
        %v890 = vstv %s889
        %v891 = vmul.f32 %v183, %v890
        %s892 = sld [smem:[#allocation2 + $0x1b]]
        %v893 = vstv %s892
        %v894 = vmul.f32 %v383, %v893
        %s895 = sld [smem:[#allocation2 + $0x43]]
        %v896 = vstv %s895
        %v897 = vmul.f32 %v185, %v896
        %v898 = vadd.f32 %v888, %v894
        %v899 = vadd.f32 %v891, %v897
        %s900 = sld [smem:[#allocation2 + $0x1f]]
        %v901 = vstv %s900
        %v902 = vmul.f32 %v306, %v901
        %s903 = sld [smem:[#allocation2 + $0x47]]
        %v904 = vstv %s903
        %v905 = vmul.f32 %v183, %v904
        %907 = vrot.lane.b32.xlu0 %v902, 127
        %v908 = vpop.permute.xlu0 %907
        %v910 = vadd.f32 %v898, %v908
        %912 = vrot.lane.b32.xlu0 %v905, 127
        %v913 = vpop.permute.xlu0 %912
        %v915 = vadd.f32 %v899, %v913
        %s916 = sld [smem:[#allocation2 + $0x23]]
        %v917 = vstv %s916
        %v918 = vmul.f32 %v460, %v917
        %s919 = sld [smem:[#allocation2 + $0x4b]]
        %v920 = vstv %s919
        %v921 = vmul.f32 %v187, %v920
        %v922 = vadd.f32 %v910, %v918
        %v923 = vadd.f32 %v915, %v921
        %s924 = sld [smem:[#allocation2 + $0x27]]
        %v925 = vstv %s924
        %v926 = vmul.f32 %v537, %v925
        %s927 = sld [smem:[#allocation2 + $0x4f]]
        %v928 = vstv %s927
        %v929 = vmul.f32 %v189, %v928
        %v930 = vadd.f32 %v922, %v926
        %v931 = vadd.f32 %v923, %v929
        %s932 = sld [smem:[#allocation2 + $0x2b]]
        %v933 = vstv %s932
        %v934 = vmul.f32 %v460, %v933
        %s935 = sld [smem:[#allocation2 + $0x53]]
        %v936 = vstv %s935
        %v937 = vmul.f32 %v187, %v936
        %939 = vrot.lane.b32.xlu0 %v934, 127
        %v940 = vpop.permute.xlu0 %939
        %v942 = vadd.f32 %v930, %v940
        %944 = vrot.lane.b32.xlu0 %v937, 127
        %v945 = vpop.permute.xlu0 %944
        %v947 = vadd.f32 %v931, %v945
        %s948 = sld [smem:[#allocation2 + $0x2f]]
        %v949 = vstv %s948
        %v950 = vmul.f32 %v306, %v949
        %s951 = sld [smem:[#allocation2 + $0x57]]
        %v952 = vstv %s951
        %v953 = vmul.f32 %v183, %v952
        %955 = vrot.lane.b32.xlu0 %v950, 119
        %v956 = vpop.permute.xlu0 %955
        %v958 = vadd.f32 %v942, %v956
        %960 = vrot.lane.b32.xlu0 %v953, 119
        %v961 = vpop.permute.xlu0 %960
        %v963 = vadd.f32 %v947, %v961
        %s964 = sld [smem:[#allocation2 + $0x33]]
        %v965 = vstv %s964
        %v966 = vmul.f32 %v383, %v965
        %s967 = sld [smem:[#allocation2 + $0x5b]]
        %v968 = vstv %s967
        %v969 = vmul.f32 %v185, %v968
        %971 = vrot.lane.b32.xlu0 %v966, 119
        %v972 = vpop.permute.xlu0 %971
        %v974 = vadd.f32 %v958, %v972
        %976 = vrot.lane.b32.xlu0 %v969, 119
        %v977 = vpop.permute.xlu0 %976
        %v979 = vadd.f32 %v963, %v977
        %s980 = sld [smem:[#allocation2 + $0x37]]
        %v981 = vstv %s980
        %v982 = vmul.f32 %v306, %v981
        %s983 = sld [smem:[#allocation2 + $0x5f]]
        %v984 = vstv %s983
        %v985 = vmul.f32 %v183, %v984
        %987 = vrot.lane.b32.xlu0 %v982, 118
        %v988 = vpop.permute.xlu0 %987
        %v990 = vadd.f32 %v974, %v988
        %992 = vrot.lane.b32.xlu0 %v985, 118
        %v993 = vpop.permute.xlu0 %992
        %v995 = vadd.f32 %v979, %v993
        %s996 = sld [smem:[#allocation2 + $0x3b]]
        %v997 = vstv %s996
        %v998 = vadd.f32 %v990, %v997
        %s999 = sld [smem:[#allocation2 + $0x63]]
        %v1000 = vstv %s999
        %v1001 = vadd.f32 %v995, %v1000
        %s1002 = sld [smem:[#allocation2 + $0x64]]
        %v1003 = vstv %s1002
        %v1004 = vmul.f32 %v650, %v1003
        %s1005 = sld [smem:[#allocation2 + $0x78]]
        %v1006 = vstv %s1005
        %v1007 = vmul.f32 %v653, %v1006
        %s1008 = sld [smem:[#allocation2 + $0x68]]
        %v1009 = vstv %s1008
        %v1010 = vmul.f32 %v766, %v1009
        %s1011 = sld [smem:[#allocation2 + $0x7c]]
        %v1012 = vstv %s1011
        %v1013 = vmul.f32 %v769, %v1012
        %v1014 = vadd.f32 %v1004, %v1010
        %v1016 = vrot.slane %v1013, 1
        %v1018 = vadd.f32 %v1007, %v1016
        %s1019 = sld [smem:[#allocation2 + $0x6c]]
        %v1020 = vstv %s1019
        %v1021 = vmul.f32 %v882, %v1020
        %s1022 = sld [smem:[#allocation2 + $0x80]]
        %v1023 = vstv %s1022
        %v1024 = vmul.f32 %v885, %v1023
        %v1025 = vadd.f32 %v1014, %v1021
        %v1027 = vrot.slane %v1024, 2
        %v1029 = vadd.f32 %v1018, %v1027
        %s1030 = sld [smem:[#allocation2 + $0x70]]
        %v1031 = vstv %s1030
        %v1032 = vmul.f32 %v998, %v1031
        %s1033 = sld [smem:[#allocation2 + $0x84]]
        %v1034 = vstv %s1033
        %v1035 = vmul.f32 %v1001, %v1034
        %v1036 = vadd.f32 %v1025, %v1032
        %v1038 = vrot.slane %v1035, 3
        %v1040 = vadd.f32 %v1029, %v1038
        %s1041 = sld [smem:[#allocation2 + $0x74]]
        %v1042 = vstv %s1041
        %v1043 = vadd.f32 %v1036, %v1042
        %v1044 = vmax.f32 %v1043, 0.0
        %vm1045 = vcmask 581632
        %1046 = vst.msk [vmem:[%s182 + $0x2] sm:$0x1] %vm1045, %v1044
        %s1047 = sld [smem:[#allocation2 + $0x88]]
        %v1048 = vstv %s1047
        %v1049 = vadd.f32 %v1040, %v1048
        %v1050 = vmax.f32 %v1049, 0.0
        %1051 = vst.msk [vmem:[%s182] sm:$0x1] %vm1045, %v1050
        %s1052 = sld [smem:[#allocation2 + $0x65]]
        %v1053 = vstv %s1052
        %v1054 = vmul.f32 %v650, %v1053
        %s1055 = sld [smem:[#allocation2 + $0x79]]
        %v1056 = vstv %s1055
        %v1057 = vmul.f32 %v653, %v1056
        %s1058 = sld [smem:[#allocation2 + $0x69]]
        %v1059 = vstv %s1058
        %v1060 = vmul.f32 %v766, %v1059
        %s1061 = sld [smem:[#allocation2 + $0x7d]]
        %v1062 = vstv %s1061
        %v1063 = vmul.f32 %v769, %v1062
        %v1064 = vadd.f32 %v1054, %v1060
        %v1066 = vrot.slane %v1063, 1
        %v1068 = vadd.f32 %v1057, %v1066
        %s1069 = sld [smem:[#allocation2 + $0x6d]]
        %v1070 = vstv %s1069
        %v1071 = vmul.f32 %v882, %v1070
        %s1072 = sld [smem:[#allocation2 + $0x81]]
        %v1073 = vstv %s1072
        %v1074 = vmul.f32 %v885, %v1073
        %v1075 = vadd.f32 %v1064, %v1071
        %v1077 = vrot.slane %v1074, 2
        %v1079 = vadd.f32 %v1068, %v1077
        %s1080 = sld [smem:[#allocation2 + $0x71]]
        %v1081 = vstv %s1080
        %v1082 = vmul.f32 %v998, %v1081
        %s1083 = sld [smem:[#allocation2 + $0x85]]
        %v1084 = vstv %s1083
        %v1085 = vmul.f32 %v1001, %v1084
        %v1086 = vadd.f32 %v1075, %v1082
        %v1088 = vrot.slane %v1085, 3
        %v1090 = vadd.f32 %v1079, %v1088
        %s1091 = sld [smem:[#allocation2 + $0x75]]
        %v1092 = vstv %s1091
        %v1093 = vadd.f32 %v1086, %v1092
        %v1094 = vmax.f32 %v1093, 0.0
        %1095 = vst.msk [vmem:[%s182 + $0x6] sm:$0x1] %vm1045, %v1094
        %s1096 = sld [smem:[#allocation2 + $0x89]]
        %v1097 = vstv %s1096
        %v1098 = vadd.f32 %v1090, %v1097
        %v1099 = vmax.f32 %v1098, 0.0
        %1100 = vst.msk [vmem:[%s182 + $0x4] sm:$0x1] %vm1045, %v1099
        %s1101 = sld [smem:[#allocation2 + $0x66]]
        %v1102 = vstv %s1101
        %v1103 = vmul.f32 %v650, %v1102
        %s1104 = sld [smem:[#allocation2 + $0x7a]]
        %v1105 = vstv %s1104
        %v1106 = vmul.f32 %v653, %v1105
        %s1107 = sld [smem:[#allocation2 + $0x6a]]
        %v1108 = vstv %s1107
        %v1109 = vmul.f32 %v766, %v1108
        %s1110 = sld [smem:[#allocation2 + $0x7e]]
        %v1111 = vstv %s1110
        %v1112 = vmul.f32 %v769, %v1111
        %v1113 = vadd.f32 %v1103, %v1109
        %v1115 = vrot.slane %v1112, 1
        %v1117 = vadd.f32 %v1106, %v1115
        %s1118 = sld [smem:[#allocation2 + $0x6e]]
        %v1119 = vstv %s1118
        %v1120 = vmul.f32 %v882, %v1119
        %s1121 = sld [smem:[#allocation2 + $0x82]]
        %v1122 = vstv %s1121
        %v1123 = vmul.f32 %v885, %v1122
        %v1124 = vadd.f32 %v1113, %v1120
        %v1126 = vrot.slane %v1123, 2
        %v1128 = vadd.f32 %v1117, %v1126
        %s1129 = sld [smem:[#allocation2 + $0x72]]
        %v1130 = vstv %s1129
        %v1131 = vmul.f32 %v998, %v1130
        %s1132 = sld [smem:[#allocation2 + $0x86]]
        %v1133 = vstv %s1132
        %v1134 = vmul.f32 %v1001, %v1133
        %v1135 = vadd.f32 %v1124, %v1131
        %v1137 = vrot.slane %v1134, 3
        %v1139 = vadd.f32 %v1128, %v1137
        %s1140 = sld [smem:[#allocation2 + $0x76]]
        %v1141 = vstv %s1140
        %v1142 = vadd.f32 %v1135, %v1141
        %v1143 = vmax.f32 %v1142, 0.0
        %1144 = vst.msk [vmem:[%s182 + $0x3] sm:$0x1] %vm1045, %v1143
        %s1145 = sld [smem:[#allocation2 + $0x8a]]
        %v1146 = vstv %s1145
        %v1147 = vadd.f32 %v1139, %v1146
        %v1148 = vmax.f32 %v1147, 0.0
        %1149 = vst.msk [vmem:[%s182 + $0x1] sm:$0x1] %vm1045, %v1148
        %s1150 = sld [smem:[#allocation2 + $0x67]]
        %v1151 = vstv %s1150
        %v1152 = vmul.f32 %v650, %v1151
        %s1153 = sld [smem:[#allocation2 + $0x7b]]
        %v1154 = vstv %s1153
        %v1155 = vmul.f32 %v653, %v1154
        %s1156 = sld [smem:[#allocation2 + $0x6b]]
        %v1157 = vstv %s1156
        %v1158 = vmul.f32 %v766, %v1157
        %s1159 = sld [smem:[#allocation2 + $0x7f]]
        %v1160 = vstv %s1159
        %v1161 = vmul.f32 %v769, %v1160
        %v1162 = vadd.f32 %v1152, %v1158
        %v1164 = vrot.slane %v1161, 1
        %v1166 = vadd.f32 %v1155, %v1164
        %s1167 = sld [smem:[#allocation2 + $0x6f]]
        %v1168 = vstv %s1167
        %v1169 = vmul.f32 %v882, %v1168
        %s1170 = sld [smem:[#allocation2 + $0x83]]
        %v1171 = vstv %s1170
        %v1172 = vmul.f32 %v885, %v1171
        %v1173 = vadd.f32 %v1162, %v1169
        %v1175 = vrot.slane %v1172, 2
        %v1177 = vadd.f32 %v1166, %v1175
        %s1178 = sld [smem:[#allocation2 + $0x73]]
        %v1179 = vstv %s1178
        %v1180 = vmul.f32 %v998, %v1179
        %s1181 = sld [smem:[#allocation2 + $0x87]]
        %v1182 = vstv %s1181
        %v1183 = vmul.f32 %v1001, %v1182
        %v1184 = vadd.f32 %v1173, %v1180
        %v1186 = vrot.slane %v1183, 3
        %v1188 = vadd.f32 %v1177, %v1186
        %s1189 = sld [smem:[#allocation2 + $0x77]]
        %v1190 = vstv %s1189
        %v1191 = vadd.f32 %v1184, %v1190
        %v1192 = vmax.f32 %v1191, 0.0
        %1193 = vst.msk [vmem:[%s182 + $0x7] sm:$0x1] %vm1045, %v1192
        %s1194 = sld [smem:[#allocation2 + $0x8b]]
        %v1195 = vstv %s1194
        %v1196 = vadd.f32 %v1188, %v1195
        %v1197 = vmax.f32 %v1196, 0.0
        %1198 = vst.msk [vmem:[%s182 + $0x5] sm:$0x1] %vm1045, %v1197
        %p1199 = scmp.lt.s32.totalorder %s15, 1
        %s1200 = scalar_select %p1199, %s15, 1
        %s1201 = smul.addr %s1200, 8
        %s1202 = scalar_lea.vmem %s3, %s1201
        // Predicated region
        $region37: #{_pallas_forward.1} parent=31 // pred_check
          %p1203 = pneg %p101
        $region38: #{_pallas_forward.1} parent=31 // pred_check_branch
          %1205 = sbr.rel (%p1203) target = $region40
        $region39: #{_pallas_forward.1} parent=31 // pred_region
          _
        $region40: #{_pallas_forward.1} parent=31 // pred_fallthru
          _
      $region32: #{_pallas_forward.1} parent=5 // pred_fallthru
        _
      %p1206 = scmp.le.s32.totalorder 2, %s10
      // Predicated region
      $region41: #{_pallas_forward.1} parent=5 // pred_check
        %p1207 = pneg %p1206
      $region42: #{_pallas_forward.1} parent=5 // pred_check_branch
        %1209 = sbr.rel (%p1207) target = $region44
      $region43: #{_pallas_forward.1} parent=5 // pred_region
        %s1210 = ssub.s32 %s10, 2
        // Predicated region
        $region45: #{_pallas_forward.1} parent=43 // pred_check
          %p1211 = pneg %p107
        $region46: #{_pallas_forward.1} parent=43 // pred_check_branch
          %1213 = sbr.rel (%p1211) target = $region48
        $region47: #{_pallas_forward.1} parent=43 // pred_region
          %p1214 = scmp.lt.s32.totalorder %s16, 1
          %s1215 = scalar_select %p1214, %s16, 1
          %s1216 = smul.addr %s1215, 8
          %s1217 = scalar_lea.vmem %s3, %s1216
        $region48: #{_pallas_forward.1} parent=43 // pred_fallthru
          _
      $region44: #{_pallas_forward.1} parent=5 // pred_fallthru
        _
    $region6: #{_pallas_forward.1} parent=1 // loop_footer
      %s14 = sadd.s32 1, %s10
    $region7: #{_pallas_forward.1} parent=1 // loop_footer_branch
      %9 = sbr.rel target = $region3
    $region8: #{_pallas_forward.1} parent=1 // loop_exit
      _
    %1218 = vsyncpa [#allocation3], 1
    %s1219 = scalar_lea.sflag [#allocation3], 1
    %1220 = vsyncpa %s1219, 1

</llo_original>
